<compile_context>
chip_gen: v5e
topology: v5e:2x2
jax: 0.10.0
libtpu: 0.0.40
codegen_flags: <defaults>
</compile_context>

<pallas_src>
import jax
import jax.numpy as jnp
from jax import lax
from jax.experimental import pallas as pl
from jax.experimental.pallas import tpu as pltpu


def lstm_forward(x, params):
    """x: (T, B, F) float32.  Returns (T, B, OUT) float32."""
    T, B, F = x.shape
    H = params["whh_f"].shape[0] // 4          # whh_* is (4H, H)
    OUT = params["wfc2"].shape[0]
    OUT_PAD = 128                              # lane-dense output width
    H2, H4, H6, H8 = 2 * H, 4 * H, 6 * H, 8 * H
    f32, bf16 = jnp.float32, jnp.bfloat16

    def gate_cols(Wt):   # Wt: (in, 4H), PyTorch gate order [i, f, g, o]
        return (Wt[:, 0 * H:1 * H], Wt[:, 1 * H:2 * H],
                Wt[:, 2 * H:3 * H], Wt[:, 3 * H:4 * H])

    # ---------- host-side weight re-layout (tiny, one-off) ----------
    wih_f_t, wih_b_t = params["wih_f"].T, params["wih_b"].T     # (F, 4H)
    whh_f_t, whh_b_t = params["whh_f"].T, params["whh_b"].T     # (H, 4H)
    b_f = params["bih_f"] + params["bhh_f"]                     # (4H,)
    b_b = params["bih_b"] + params["bhh_b"]

    i_f, f_f, g_f, o_f = gate_cols(wih_f_t)
    i_b, f_b, g_b, o_b = gate_cols(wih_b_t)
    Zf = jnp.zeros((F, H), f32)
    # Fused gate column layout (width 8H): [i_f,i_b | f_f,f_b | o_f,o_b | g_f,g_b]
    # -> "sigmoid" over cols [0:6H), tanh over [6H:8H); boundaries 128-lane aligned.
    wx = jnp.concatenate([
        jnp.concatenate([i_f, Zf, f_f, Zf, o_f, Zf, g_f, Zf], axis=1),   # rows for x[t]
        jnp.concatenate([Zf, i_b, Zf, f_b, Zf, o_b, Zf, g_b], axis=1),   # rows for x[T-1-t]
    ], axis=0).astype(bf16)                                              # (2F, 8H) bf16

    ri_f, rf_f, rg_f, ro_f = gate_cols(whh_f_t)
    ri_b, rf_b, rg_b, ro_b = gate_cols(whh_b_t)
    Zh = jnp.zeros((H, H), f32)
    whh_bd = jnp.concatenate([
        jnp.concatenate([ri_f, Zh, rf_f, Zh, ro_f, Zh, rg_f, Zh], axis=1),  # h_fwd rows
        jnp.concatenate([Zh, ri_b, Zh, rf_b, Zh, ro_b, Zh, rg_b], axis=1),  # h_bwd rows
    ], axis=0).astype(bf16)                                                 # (2H, 8H) bf16

    def gate_vec(b):
        return b[0 * H:1 * H], b[1 * H:2 * H], b[2 * H:3 * H], b[3 * H:4 * H]

    bi_f, bff, bg_f, bo_f = gate_vec(b_f)
    bi_b, bfb, bg_b, bo_b = gate_vec(b_b)
    b_comb = jnp.concatenate(
        [bi_f, bi_b, bff, bfb, bo_f, bo_b, bg_f, bg_b]).reshape(1, H8)      # f32

    # fc -> fc2 have no activation between them in the PyTorch model: fold them,
    # then zero-pad columns to 128 lanes so the final store is unmasked.
    wfc_fold = params["wfc"].T @ params["wfc2"].T                           # (2H, OUT)
    bfc_fold = params["bfc"] @ params["wfc2"].T + params["bfc2"]            # (OUT,)
    wfc_pad = jnp.zeros((H2, OUT_PAD), f32).at[:, :OUT].set(wfc_fold)
    bfc_pad = jnp.zeros((1, OUT_PAD), f32).at[0, :OUT].set(bfc_fold)

    # Forward-order rows next to time-reversed rows -> one input-projection matmul.
    xcomb = jnp.concatenate(
        [x.reshape(T * B, F), x[::-1].reshape(T * B, F)], axis=1).astype(bf16)  # (T*B, 2F)

    # ---------- the fused kernel ----------
    def kernel(xc_ref, wx_ref, bx_ref, whh_hbm, wfc_ref, bfc_ref, out_ref,
               whh_buf, whh_sem, xproj_ref, hseq_ref):
        # Kick off the recurrent-weight DMA; it hides behind the hoisted
        # input-projection matmul below.
        whh_cp = pltpu.make_async_copy(whh_hbm, whh_buf, whh_sem)
        whh_cp.start()

        # Hoisted input projection (both directions, all timesteps, biases folded),
        # staged in VMEM so per-step slices are plain vector loads.
        xproj_ref[...] = (jnp.dot(xc_ref[...], wx_ref[...],
                                  preferred_element_type=jnp.float32)
                          + bx_ref[...])                                     # (T*B, 8H) f32

        whh_cp.wait()
        whh = whh_buf[...]                           # (2H, 8H) bf16, block-diagonal

        h = jnp.zeros((B, H2), jnp.float32)          # [h_fwd | h_bwd]
        c = jnp.zeros((B, H2), jnp.float32)          # [c_fwd | c_bwd]

        # Fully unrolled fused fwd+bwd recurrence (T is small and static):
        # step s advances the forward dir over time s and the backward dir over T-1-s.
        for s in range(T):
            gates = xproj_ref[s * B:(s + 1) * B, :] + jnp.dot(
                h.astype(jnp.bfloat16), whh,
                preferred_element_type=jnp.float32)                         # (B, 8H) f32
            # sigmoid(x) == 0.5*tanh(0.5*x)+0.5 : single EUP pass per step.
            sig = 0.5 * jnp.tanh(0.5 * gates[:, :H6]) + 0.5   # i | f | o (both dirs)
            g_g = jnp.tanh(gates[:, H6:])                      # g         (both dirs)
            i_g = sig[:, 0:H2]
            f_g = sig[:, H2:H4]
            o_g = sig[:, H4:H6]
            c = f_g * c + i_g * g_g
            h = o_g * jnp.tanh(c)
            # Scatter into output-time order; lane offsets match the source, so
            # these are plain masked stores, off the carry chain.
            hseq_ref[s * B:(s + 1) * B, 0:H] = h[:, 0:H]
            hseq_ref[(T - 1 - s) * B:(T - s) * B, H:H2] = h[:, H:H2]

        # Folded fc+fc2 over the lane-dense (T*B, 2H) hidden sequence; output is
        # padded to 128 lanes -> unmasked stores.
        out_ref[...] = (jnp.dot(hseq_ref[...], wfc_ref[...],
                                preferred_element_type=jnp.float32) + bfc_ref[...])

    vmem = pl.BlockSpec(memory_space=pltpu.MemorySpace.VMEM)
    anym = pl.BlockSpec(memory_space=pl.ANY)
    y2d = pl.pallas_call(
        kernel,
        out_shape=jax.ShapeDtypeStruct((T * B, OUT_PAD), jnp.float32),
        in_specs=[vmem, vmem, vmem, anym, vmem, vmem],
        out_specs=vmem,
        scratch_shapes=[
            pltpu.VMEM((H2, H8), bf16),          # whh double-buffer target
            pltpu.SemaphoreType.DMA,             # whh DMA completion
            pltpu.VMEM((T * B, H8), f32),        # staged input projection
            pltpu.VMEM((T * B, H2), f32),        # hidden sequence (lane-dense)
        ],
    )(xcomb, wx, b_comb, whh_bd, wfc_pad, bfc_pad)

    return y2d[:, :OUT].reshape(T, B, OUT)


def init_params(key, in_features=14, out_features=14, hidden_size=64):
    H = hidden_size
    ks = jax.random.split(key, 12)
    u = lambda k, shape, bound: jax.random.uniform(k, shape, jnp.float32, -bound, bound)
    kl = 1.0 / jnp.sqrt(H)
    kfc = 1.0 / jnp.sqrt(2 * H)
    kfc2 = 1.0 / jnp.sqrt(32)
    return {
        # forward-direction LSTM (PyTorch layout: (4H, in), gate order i,f,g,o)
        "wih_f": u(ks[0], (4 * H, in_features), kl),
        "whh_f": u(ks[1], (4 * H, H), kl),
        "bih_f": u(ks[2], (4 * H,), kl),
        "bhh_f": u(ks[3], (4 * H,), kl),
        # reverse-direction LSTM
        "wih_b": u(ks[4], (4 * H, in_features), kl),
        "whh_b": u(ks[5], (4 * H, H), kl),
        "bih_b": u(ks[6], (4 * H,), kl),
        "bhh_b": u(ks[7], (4 * H,), kl),
        # fc: 2H -> 32
        "wfc": u(ks[8], (32, 2 * H), kfc),
        "bfc": u(ks[9], (32,), kfc),
        # fc2: 32 -> out_features
        "wfc2": u(ks[10], (out_features, 32), kfc2),
        "bfc2": u(ks[11], (out_features,), kfc2),
    }


def reference_forward(x, params):
    """Pure-JAX reference matching PyTorch nn.LSTM(bidirectional=True) + fc + fc2."""
    T, B, F = x.shape
    H = params["whh_f"].shape[0] // 4

    def run_dir(wih, whh, bih, bhh, xs):
        def step(carry, x_t):
            h, c = carry
            gates = x_t @ wih.T + h @ whh.T + bih + bhh
            i_g = jax.nn.sigmoid(gates[:, 0 * H:1 * H])
            f_g = jax.nn.sigmoid(gates[:, 1 * H:2 * H])
            g_g = jnp.tanh(gates[:, 2 * H:3 * H])
            o_g = jax.nn.sigmoid(gates[:, 3 * H:4 * H])
            c_new = f_g * c + i_g * g_g
            h_new = o_g * jnp.tanh(c_new)
            return (h_new, c_new), h_new

        init = (jnp.zeros((B, H)), jnp.zeros((B, H)))
        _, hs = lax.scan(step, init, xs)
        return hs

    hf = run_dir(params["wih_f"], params["whh_f"], params["bih_f"], params["bhh_f"], x)
    hb = run_dir(params["wih_b"], params["whh_b"], params["bih_b"], params["bhh_b"], x[::-1])[::-1]
    out = jnp.concatenate([hf, hb], axis=-1)
    z = out @ params["wfc"].T + params["bfc"]
    return z @ params["wfc2"].T + params["bfc2"]


if __name__ == "__main__":
    T, B, F, H, OUT = 8, 2, 14, 64, 14
    key = jax.random.PRNGKey(0)
    kx, kp = jax.random.split(key)
    x = jax.random.normal(kx, (T, B, F), jnp.float32)
    params = init_params(kp, in_features=F, out_features=OUT, hidden_size=H)

    y = jax.block_until_ready(lstm_forward(x, params))
    y_ref = jax.block_until_ready(reference_forward(x, params))

    assert y.shape == (T, B, OUT)
    # bf16 MXU operands (f32 accumulation) add a small rounding delta vs. the
    # pure-f32 reference; estimated worst-case output error is well under 2e-3.
    max_err = float(jnp.max(jnp.abs(y - y_ref)))
    assert jnp.allclose(y, y_ref, atol=2e-3, rtol=2e-3), max_err

    print("KERNEL_OK")
</pallas_src>

<mosaic_0001>
module attributes {stable_mosaic.version = 11 : i64} {
  func.func @kernel(%arg0: memref<16x28xbf16, #tpu.memory_space<vmem>>, %arg1: memref<28x512xbf16, #tpu.memory_space<vmem>>, %arg2: memref<1x512xf32, #tpu.memory_space<vmem>>, %arg3: memref<128x512xbf16, #tpu.memory_space<any>>, %arg4: memref<128x128xf32, #tpu.memory_space<vmem>>, %arg5: memref<1x128xf32, #tpu.memory_space<vmem>>, %arg6: memref<16x128xf32, #tpu.memory_space<vmem>>, %arg7: memref<128x512xbf16, #tpu.memory_space<vmem>>, %arg8: memref<!tpu.dma_semaphore, #tpu.memory_space<semaphore_mem>>, %arg9: memref<16x512xf32, #tpu.memory_space<vmem>>, %arg10: memref<16x128xf32, #tpu.memory_space<vmem>>) attributes {dimension_semantics = [], scalar_prefetch = 0 : i64, scratch_operands = 4 : i64, tpu.core_type = #tpu.core_type<tc>} {
    tpu.enqueue_dma source(%arg3 : memref<128x512xbf16, #tpu.memory_space<any>>) target(%arg7 : memref<128x512xbf16, #tpu.memory_space<vmem>>) target_semaphore(%arg8 : memref<!tpu.dma_semaphore, #tpu.memory_space<semaphore_mem>>)
    %c0 = arith.constant 0 : index
    %c0_0 = arith.constant 0 : index
    %0 = vector.load %arg0[%c0, %c0_0] : memref<16x28xbf16, #tpu.memory_space<vmem>>, vector<16x28xbf16>
    %c0_1 = arith.constant 0 : index
    %c0_2 = arith.constant 0 : index
    %1 = vector.load %arg1[%c0_1, %c0_2] : memref<28x512xbf16, #tpu.memory_space<vmem>>, vector<28x512xbf16>
    %cst = arith.constant dense<0.000000e+00> : vector<16x512xf32>
    %2 = tpu.matmul %0, %1, %cst {dimension_numbers = #tpu.dot_dimension_numbers<[1], [0], [0], [1], [0, 0, 1, 1], [], []>} : vector<16x28xbf16>, vector<28x512xbf16>, vector<16x512xf32> -> vector<16x512xf32>
    %c0_3 = arith.constant 0 : index
    %c0_4 = arith.constant 0 : index
    %3 = vector.load %arg2[%c0_3, %c0_4] : memref<1x512xf32, #tpu.memory_space<vmem>>, vector<1x512xf32>
    %4 = vector.broadcast %3 : vector<1x512xf32> to vector<16x512xf32>
    %5 = arith.addf %2, %4 : vector<16x512xf32>
    %c0_5 = arith.constant 0 : index
    %c0_6 = arith.constant 0 : index
    %6 = vector.load %arg9[%c0_5, %c0_6] : memref<16x512xf32, #tpu.memory_space<vmem>>, vector<16x512xf32>
    tpu.vector_store %arg9[%c0_5, %c0_6], %5 {strides = array<i32>} : memref<16x512xf32, #tpu.memory_space<vmem>>, vector<16x512xf32>,
    tpu.wait_dma2 semaphore(%arg8 : memref<!tpu.dma_semaphore, #tpu.memory_space<semaphore_mem>>) src(%arg3 : memref<128x512xbf16, #tpu.memory_space<any>>) dst(%arg7 : memref<128x512xbf16, #tpu.memory_space<vmem>>)
    %c0_7 = arith.constant 0 : index
    %c0_8 = arith.constant 0 : index
    %7 = vector.load %arg7[%c0_7, %c0_8] : memref<128x512xbf16, #tpu.memory_space<vmem>>, vector<128x512xbf16>
    %cst_9 = arith.constant 0.000000e+00 : f32
    %8 = vector.broadcast %cst_9 : f32 to vector<2x128xf32>
    %cst_10 = arith.constant 0.000000e+00 : f32
    %9 = vector.broadcast %cst_10 : f32 to vector<2x128xf32>
    %c0_11 = arith.constant 0 : index
    %c0_12 = arith.constant 0 : index
    %10 = vector.load %arg9[%c0_11, %c0_12] : memref<16x512xf32, #tpu.memory_space<vmem>>, vector<2x512xf32>
    %11 = arith.truncf %8 : vector<2x128xf32> to vector<2x128xbf16>
    %cst_13 = arith.constant dense<0.000000e+00> : vector<2x512xf32>
    %12 = tpu.matmul %11, %7, %cst_13 {dimension_numbers = #tpu.dot_dimension_numbers<[1], [0], [0], [1], [0, 0, 1, 1], [], []>} : vector<2x128xbf16>, vector<128x512xbf16>, vector<2x512xf32> -> vector<2x512xf32>
    %13 = arith.addf %10, %12 : vector<2x512xf32>
    %14 = vector.extract_strided_slice %13 {offsets = [0, 0], sizes = [2, 384], strides = [1, 1]} : vector<2x512xf32> to vector<2x384xf32>
    %cst_14 = arith.constant 5.000000e-01 : f32
    %15 = vector.broadcast %cst_14 : f32 to vector<2x384xf32>
    %16 = arith.mulf %15, %14 : vector<2x384xf32>
    %17 = math.tanh %16 : vector<2x384xf32>
    %cst_15 = arith.constant 5.000000e-01 : f32
    %18 = vector.broadcast %cst_15 : f32 to vector<2x384xf32>
    %19 = arith.mulf %18, %17 : vector<2x384xf32>
    %cst_16 = arith.constant 5.000000e-01 : f32
    %20 = vector.broadcast %cst_16 : f32 to vector<2x384xf32>
    %21 = arith.addf %19, %20 : vector<2x384xf32>
    %22 = vector.extract_strided_slice %13 {offsets = [0, 384], sizes = [2, 128], strides = [1, 1]} : vector<2x512xf32> to vector<2x128xf32>
    %23 = math.tanh %22 : vector<2x128xf32>
    %24 = vector.extract_strided_slice %21 {offsets = [0, 0], sizes = [2, 128], strides = [1, 1]} : vector<2x384xf32> to vector<2x128xf32>
    %25 = vector.extract_strided_slice %21 {offsets = [0, 128], sizes = [2, 128], strides = [1, 1]} : vector<2x384xf32> to vector<2x128xf32>
    %26 = vector.extract_strided_slice %21 {offsets = [0, 256], sizes = [2, 128], strides = [1, 1]} : vector<2x384xf32> to vector<2x128xf32>
    %27 = arith.mulf %25, %9 : vector<2x128xf32>
    %28 = arith.mulf %24, %23 : vector<2x128xf32>
    %29 = arith.addf %27, %28 : vector<2x128xf32>
    %30 = math.tanh %29 : vector<2x128xf32>
    %31 = arith.mulf %26, %30 : vector<2x128xf32>
    %32 = vector.extract_strided_slice %31 {offsets = [0, 0], sizes = [2, 64], strides = [1, 1]} : vector<2x128xf32> to vector<2x64xf32>
    %c0_17 = arith.constant 0 : index
    %c0_18 = arith.constant 0 : index
    %33 = vector.load %arg10[%c0_17, %c0_18] : memref<16x128xf32, #tpu.memory_space<vmem>>, vector<2x64xf32>
    tpu.vector_store %arg10[%c0_17, %c0_18], %32 {strides = array<i32>} : memref<16x128xf32, #tpu.memory_space<vmem>>, vector<2x64xf32>,
    %34 = vector.extract_strided_slice %31 {offsets = [0, 64], sizes = [2, 64], strides = [1, 1]} : vector<2x128xf32> to vector<2x64xf32>
    %c14 = arith.constant 14 : index
    %c64 = arith.constant 64 : index
    %35 = vector.load %arg10[%c14, %c64] : memref<16x128xf32, #tpu.memory_space<vmem>>, vector<2x64xf32>
    tpu.vector_store %arg10[%c14, %c64], %34 {strides = array<i32>} : memref<16x128xf32, #tpu.memory_space<vmem>>, vector<2x64xf32>,
    %c2 = arith.constant 2 : index
    %c0_19 = arith.constant 0 : index
    %36 = vector.load %arg9[%c2, %c0_19] : memref<16x512xf32, #tpu.memory_space<vmem>>, vector<2x512xf32>
    %37 = arith.truncf %31 : vector<2x128xf32> to vector<2x128xbf16>
    %cst_20 = arith.constant dense<0.000000e+00> : vector<2x512xf32>
    %38 = tpu.matmul %37, %7, %cst_20 {dimension_numbers = #tpu.dot_dimension_numbers<[1], [0], [0], [1], [0, 0, 1, 1], [], []>} : vector<2x128xbf16>, vector<128x512xbf16>, vector<2x512xf32> -> vector<2x512xf32>
    %39 = arith.addf %36, %38 : vector<2x512xf32>
    %40 = vector.extract_strided_slice %39 {offsets = [0, 0], sizes = [2, 384], strides = [1, 1]} : vector<2x512xf32> to vector<2x384xf32>
    %cst_21 = arith.constant 5.000000e-01 : f32
    %41 = vector.broadcast %cst_21 : f32 to vector<2x384xf32>
    %42 = arith.mulf %41, %40 : vector<2x384xf32>
    %43 = math.tanh %42 : vector<2x384xf32>
    %cst_22 = arith.constant 5.000000e-01 : f32
    %44 = vector.broadcast %cst_22 : f32 to vector<2x384xf32>
    %45 = arith.mulf %44, %43 : vector<2x384xf32>
    %cst_23 = arith.constant 5.000000e-01 : f32
    %46 = vector.broadcast %cst_23 : f32 to vector<2x384xf32>
    %47 = arith.addf %45, %46 : vector<2x384xf32>
    %48 = vector.extract_strided_slice %39 {offsets = [0, 384], sizes = [2, 128], strides = [1, 1]} : vector<2x512xf32> to vector<2x128xf32>
    %49 = math.tanh %48 : vector<2x128xf32>
    %50 = vector.extract_strided_slice %47 {offsets = [0, 0], sizes = [2, 128], strides = [1, 1]} : vector<2x384xf32> to vector<2x128xf32>
    %51 = vector.extract_strided_slice %47 {offsets = [0, 128], sizes = [2, 128], strides = [1, 1]} : vector<2x384xf32> to vector<2x128xf32>
    %52 = vector.extract_strided_slice %47 {offsets = [0, 256], sizes = [2, 128], strides = [1, 1]} : vector<2x384xf32> to vector<2x128xf32>
    %53 = arith.mulf %51, %29 : vector<2x128xf32>
    %54 = arith.mulf %50, %49 : vector<2x128xf32>
    %55 = arith.addf %53, %54 : vector<2x128xf32>
    %56 = math.tanh %55 : vector<2x128xf32>
    %57 = arith.mulf %52, %56 : vector<2x128xf32>
    %58 = vector.extract_strided_slice %57 {offsets = [0, 0], sizes = [2, 64], strides = [1, 1]} : vector<2x128xf32> to vector<2x64xf32>
    %c2_24 = arith.constant 2 : index
    %c0_25 = arith.constant 0 : index
    %59 = vector.load %arg10[%c2_24, %c0_25] : memref<16x128xf32, #tpu.memory_space<vmem>>, vector<2x64xf32>
    tpu.vector_store %arg10[%c2_24, %c0_25], %58 {strides = array<i32>} : memref<16x128xf32, #tpu.memory_space<vmem>>, vector<2x64xf32>,
    %60 = vector.extract_strided_slice %57 {offsets = [0, 64], sizes = [2, 64], strides = [1, 1]} : vector<2x128xf32> to vector<2x64xf32>
    %c12 = arith.constant 12 : index
    %c64_26 = arith.constant 64 : index
    %61 = vector.load %arg10[%c12, %c64_26] : memref<16x128xf32, #tpu.memory_space<vmem>>, vector<2x64xf32>
    tpu.vector_store %arg10[%c12, %c64_26], %60 {strides = array<i32>} : memref<16x128xf32, #tpu.memory_space<vmem>>, vector<2x64xf32>,
    %c4 = arith.constant 4 : index
    %c0_27 = arith.constant 0 : index
    %62 = vector.load %arg9[%c4, %c0_27] : memref<16x512xf32, #tpu.memory_space<vmem>>, vector<2x512xf32>
    %63 = arith.truncf %57 : vector<2x128xf32> to vector<2x128xbf16>
    %cst_28 = arith.constant dense<0.000000e+00> : vector<2x512xf32>
    %64 = tpu.matmul %63, %7, %cst_28 {dimension_numbers = #tpu.dot_dimension_numbers<[1], [0], [0], [1], [0, 0, 1, 1], [], []>} : vector<2x128xbf16>, vector<128x512xbf16>, vector<2x512xf32> -> vector<2x512xf32>
    %65 = arith.addf %62, %64 : vector<2x512xf32>
    %66 = vector.extract_strided_slice %65 {offsets = [0, 0], sizes = [2, 384], strides = [1, 1]} : vector<2x512xf32> to vector<2x384xf32>
    %cst_29 = arith.constant 5.000000e-01 : f32
    %67 = vector.broadcast %cst_29 : f32 to vector<2x384xf32>
    %68 = arith.mulf %67, %66 : vector<2x384xf32>
    %69 = math.tanh %68 : vector<2x384xf32>
    %cst_30 = arith.constant 5.000000e-01 : f32
    %70 = vector.broadcast %cst_30 : f32 to vector<2x384xf32>
    %71 = arith.mulf %70, %69 : vector<2x384xf32>
    %cst_31 = arith.constant 5.000000e-01 : f32
    %72 = vector.broadcast %cst_31 : f32 to vector<2x384xf32>
    %73 = arith.addf %71, %72 : vector<2x384xf32>
    %74 = vector.extract_strided_slice %65 {offsets = [0, 384], sizes = [2, 128], strides = [1, 1]} : vector<2x512xf32> to vector<2x128xf32>
    %75 = math.tanh %74 : vector<2x128xf32>
    %76 = vector.extract_strided_slice %73 {offsets = [0, 0], sizes = [2, 128], strides = [1, 1]} : vector<2x384xf32> to vector<2x128xf32>
    %77 = vector.extract_strided_slice %73 {offsets = [0, 128], sizes = [2, 128], strides = [1, 1]} : vector<2x384xf32> to vector<2x128xf32>
    %78 = vector.extract_strided_slice %73 {offsets = [0, 256], sizes = [2, 128], strides = [1, 1]} : vector<2x384xf32> to vector<2x128xf32>
    %79 = arith.mulf %77, %55 : vector<2x128xf32>
    %80 = arith.mulf %76, %75 : vector<2x128xf32>
    %81 = arith.addf %79, %80 : vector<2x128xf32>
    %82 = math.tanh %81 : vector<2x128xf32>
    %83 = arith.mulf %78, %82 : vector<2x128xf32>
    %84 = vector.extract_strided_slice %83 {offsets = [0, 0], sizes = [2, 64], strides = [1, 1]} : vector<2x128xf32> to vector<2x64xf32>
    %c4_32 = arith.constant 4 : index
    %c0_33 = arith.constant 0 : index
    %85 = vector.load %arg10[%c4_32, %c0_33] : memref<16x128xf32, #tpu.memory_space<vmem>>, vector<2x64xf32>
    tpu.vector_store %arg10[%c4_32, %c0_33], %84 {strides = array<i32>} : memref<16x128xf32, #tpu.memory_space<vmem>>, vector<2x64xf32>,
    %86 = vector.extract_strided_slice %83 {offsets = [0, 64], sizes = [2, 64], strides = [1, 1]} : vector<2x128xf32> to vector<2x64xf32>
    %c10 = arith.constant 10 : index
    %c64_34 = arith.constant 64 : index
    %87 = vector.load %arg10[%c10, %c64_34] : memref<16x128xf32, #tpu.memory_space<vmem>>, vector<2x64xf32>
    tpu.vector_store %arg10[%c10, %c64_34], %86 {strides = array<i32>} : memref<16x128xf32, #tpu.memory_space<vmem>>, vector<2x64xf32>,
    %c6 = arith.constant 6 : index
    %c0_35 = arith.constant 0 : index
    %88 = vector.load %arg9[%c6, %c0_35] : memref<16x512xf32, #tpu.memory_space<vmem>>, vector<2x512xf32>
    %89 = arith.truncf %83 : vector<2x128xf32> to vector<2x128xbf16>
    %cst_36 = arith.constant dense<0.000000e+00> : vector<2x512xf32>
    %90 = tpu.matmul %89, %7, %cst_36 {dimension_numbers = #tpu.dot_dimension_numbers<[1], [0], [0], [1], [0, 0, 1, 1], [], []>} : vector<2x128xbf16>, vector<128x512xbf16>, vector<2x512xf32> -> vector<2x512xf32>
    %91 = arith.addf %88, %90 : vector<2x512xf32>
    %92 = vector.extract_strided_slice %91 {offsets = [0, 0], sizes = [2, 384], strides = [1, 1]} : vector<2x512xf32> to vector<2x384xf32>
    %cst_37 = arith.constant 5.000000e-01 : f32
    %93 = vector.broadcast %cst_37 : f32 to vector<2x384xf32>
    %94 = arith.mulf %93, %92 : vector<2x384xf32>
    %95 = math.tanh %94 : vector<2x384xf32>
    %cst_38 = arith.constant 5.000000e-01 : f32
    %96 = vector.broadcast %cst_38 : f32 to vector<2x384xf32>
    %97 = arith.mulf %96, %95 : vector<2x384xf32>
    %cst_39 = arith.constant 5.000000e-01 : f32
    %98 = vector.broadcast %cst_39 : f32 to vector<2x384xf32>
    %99 = arith.addf %97, %98 : vector<2x384xf32>
    %100 = vector.extract_strided_slice %91 {offsets = [0, 384], sizes = [2, 128], strides = [1, 1]} : vector<2x512xf32> to vector<2x128xf32>
    %101 = math.tanh %100 : vector<2x128xf32>
    %102 = vector.extract_strided_slice %99 {offsets = [0, 0], sizes = [2, 128], strides = [1, 1]} : vector<2x384xf32> to vector<2x128xf32>
    %103 = vector.extract_strided_slice %99 {offsets = [0, 128], sizes = [2, 128], strides = [1, 1]} : vector<2x384xf32> to vector<2x128xf32>
    %104 = vector.extract_strided_slice %99 {offsets = [0, 256], sizes = [2, 128], strides = [1, 1]} : vector<2x384xf32> to vector<2x128xf32>
    %105 = arith.mulf %103, %81 : vector<2x128xf32>
    %106 = arith.mulf %102, %101 : vector<2x128xf32>
    %107 = arith.addf %105, %106 : vector<2x128xf32>
    %108 = math.tanh %107 : vector<2x128xf32>
    %109 = arith.mulf %104, %108 : vector<2x128xf32>
    %110 = vector.extract_strided_slice %109 {offsets = [0, 0], sizes = [2, 64], strides = [1, 1]} : vector<2x128xf32> to vector<2x64xf32>
    %c6_40 = arith.constant 6 : index
    %c0_41 = arith.constant 0 : index
    %111 = vector.load %arg10[%c6_40, %c0_41] : memref<16x128xf32, #tpu.memory_space<vmem>>, vector<2x64xf32>
    tpu.vector_store %arg10[%c6_40, %c0_41], %110 {strides = array<i32>} : memref<16x128xf32, #tpu.memory_space<vmem>>, vector<2x64xf32>,
    %112 = vector.extract_strided_slice %109 {offsets = [0, 64], sizes = [2, 64], strides = [1, 1]} : vector<2x128xf32> to vector<2x64xf32>
    %c8 = arith.constant 8 : index
    %c64_42 = arith.constant 64 : index
    %113 = vector.load %arg10[%c8, %c64_42] : memref<16x128xf32, #tpu.memory_space<vmem>>, vector<2x64xf32>
    tpu.vector_store %arg10[%c8, %c64_42], %112 {strides = array<i32>} : memref<16x128xf32, #tpu.memory_space<vmem>>, vector<2x64xf32>,
    %c8_43 = arith.constant 8 : index
    %c0_44 = arith.constant 0 : index
    %114 = vector.load %arg9[%c8_43, %c0_44] : memref<16x512xf32, #tpu.memory_space<vmem>>, vector<2x512xf32>
    %115 = arith.truncf %109 : vector<2x128xf32> to vector<2x128xbf16>
    %cst_45 = arith.constant dense<0.000000e+00> : vector<2x512xf32>
    %116 = tpu.matmul %115, %7, %cst_45 {dimension_numbers = #tpu.dot_dimension_numbers<[1], [0], [0], [1], [0, 0, 1, 1], [], []>} : vector<2x128xbf16>, vector<128x512xbf16>, vector<2x512xf32> -> vector<2x512xf32>
    %117 = arith.addf %114, %116 : vector<2x512xf32>
    %118 = vector.extract_strided_slice %117 {offsets = [0, 0], sizes = [2, 384], strides = [1, 1]} : vector<2x512xf32> to vector<2x384xf32>
    %cst_46 = arith.constant 5.000000e-01 : f32
    %119 = vector.broadcast %cst_46 : f32 to vector<2x384xf32>
    %120 = arith.mulf %119, %118 : vector<2x384xf32>
    %121 = math.tanh %120 : vector<2x384xf32>
    %cst_47 = arith.constant 5.000000e-01 : f32
    %122 = vector.broadcast %cst_47 : f32 to vector<2x384xf32>
    %123 = arith.mulf %122, %121 : vector<2x384xf32>
    %cst_48 = arith.constant 5.000000e-01 : f32
    %124 = vector.broadcast %cst_48 : f32 to vector<2x384xf32>
    %125 = arith.addf %123, %124 : vector<2x384xf32>
    %126 = vector.extract_strided_slice %117 {offsets = [0, 384], sizes = [2, 128], strides = [1, 1]} : vector<2x512xf32> to vector<2x128xf32>
    %127 = math.tanh %126 : vector<2x128xf32>
    %128 = vector.extract_strided_slice %125 {offsets = [0, 0], sizes = [2, 128], strides = [1, 1]} : vector<2x384xf32> to vector<2x128xf32>
    %129 = vector.extract_strided_slice %125 {offsets = [0, 128], sizes = [2, 128], strides = [1, 1]} : vector<2x384xf32> to vector<2x128xf32>
    %130 = vector.extract_strided_slice %125 {offsets = [0, 256], sizes = [2, 128], strides = [1, 1]} : vector<2x384xf32> to vector<2x128xf32>
    %131 = arith.mulf %129, %107 : vector<2x128xf32>
    %132 = arith.mulf %128, %127 : vector<2x128xf32>
    %133 = arith.addf %131, %132 : vector<2x128xf32>
    %134 = math.tanh %133 : vector<2x128xf32>
    %135 = arith.mulf %130, %134 : vector<2x128xf32>
    %136 = vector.extract_strided_slice %135 {offsets = [0, 0], sizes = [2, 64], strides = [1, 1]} : vector<2x128xf32> to vector<2x64xf32>
    %c8_49 = arith.constant 8 : index
    %c0_50 = arith.constant 0 : index
    %137 = vector.load %arg10[%c8_49, %c0_50] : memref<16x128xf32, #tpu.memory_space<vmem>>, vector<2x64xf32>
    tpu.vector_store %arg10[%c8_49, %c0_50], %136 {strides = array<i32>} : memref<16x128xf32, #tpu.memory_space<vmem>>, vector<2x64xf32>,
    %138 = vector.extract_strided_slice %135 {offsets = [0, 64], sizes = [2, 64], strides = [1, 1]} : vector<2x128xf32> to vector<2x64xf32>
    %c6_51 = arith.constant 6 : index
    %c64_52 = arith.constant 64 : index
    %139 = vector.load %arg10[%c6_51, %c64_52] : memref<16x128xf32, #tpu.memory_space<vmem>>, vector<2x64xf32>
    tpu.vector_store %arg10[%c6_51, %c64_52], %138 {strides = array<i32>} : memref<16x128xf32, #tpu.memory_space<vmem>>, vector<2x64xf32>,
    %c10_53 = arith.constant 10 : index
    %c0_54 = arith.constant 0 : index
    %140 = vector.load %arg9[%c10_53, %c0_54] : memref<16x512xf32, #tpu.memory_space<vmem>>, vector<2x512xf32>
    %141 = arith.truncf %135 : vector<2x128xf32> to vector<2x128xbf16>
    %cst_55 = arith.constant dense<0.000000e+00> : vector<2x512xf32>
    %142 = tpu.matmul %141, %7, %cst_55 {dimension_numbers = #tpu.dot_dimension_numbers<[1], [0], [0], [1], [0, 0, 1, 1], [], []>} : vector<2x128xbf16>, vector<128x512xbf16>, vector<2x512xf32> -> vector<2x512xf32>
    %143 = arith.addf %140, %142 : vector<2x512xf32>
    %144 = vector.extract_strided_slice %143 {offsets = [0, 0], sizes = [2, 384], strides = [1, 1]} : vector<2x512xf32> to vector<2x384xf32>
    %cst_56 = arith.constant 5.000000e-01 : f32
    %145 = vector.broadcast %cst_56 : f32 to vector<2x384xf32>
    %146 = arith.mulf %145, %144 : vector<2x384xf32>
    %147 = math.tanh %146 : vector<2x384xf32>
    %cst_57 = arith.constant 5.000000e-01 : f32
    %148 = vector.broadcast %cst_57 : f32 to vector<2x384xf32>
    %149 = arith.mulf %148, %147 : vector<2x384xf32>
    %cst_58 = arith.constant 5.000000e-01 : f32
    %150 = vector.broadcast %cst_58 : f32 to vector<2x384xf32>
    %151 = arith.addf %149, %150 : vector<2x384xf32>
    %152 = vector.extract_strided_slice %143 {offsets = [0, 384], sizes = [2, 128], strides = [1, 1]} : vector<2x512xf32> to vector<2x128xf32>
    %153 = math.tanh %152 : vector<2x128xf32>
    %154 = vector.extract_strided_slice %151 {offsets = [0, 0], sizes = [2, 128], strides = [1, 1]} : vector<2x384xf32> to vector<2x128xf32>
    %155 = vector.extract_strided_slice %151 {offsets = [0, 128], sizes = [2, 128], strides = [1, 1]} : vector<2x384xf32> to vector<2x128xf32>
    %156 = vector.extract_strided_slice %151 {offsets = [0, 256], sizes = [2, 128], strides = [1, 1]} : vector<2x384xf32> to vector<2x128xf32>
    %157 = arith.mulf %155, %133 : vector<2x128xf32>
    %158 = arith.mulf %154, %153 : vector<2x128xf32>
    %159 = arith.addf %157, %158 : vector<2x128xf32>
    %160 = math.tanh %159 : vector<2x128xf32>
    %161 = arith.mulf %156, %160 : vector<2x128xf32>
    %162 = vector.extract_strided_slice %161 {offsets = [0, 0], sizes = [2, 64], strides = [1, 1]} : vector<2x128xf32> to vector<2x64xf32>
    %c10_59 = arith.constant 10 : index
    %c0_60 = arith.constant 0 : index
    %163 = vector.load %arg10[%c10_59, %c0_60] : memref<16x128xf32, #tpu.memory_space<vmem>>, vector<2x64xf32>
    tpu.vector_store %arg10[%c10_59, %c0_60], %162 {strides = array<i32>} : memref<16x128xf32, #tpu.memory_space<vmem>>, vector<2x64xf32>,
    %164 = vector.extract_strided_slice %161 {offsets = [0, 64], sizes = [2, 64], strides = [1, 1]} : vector<2x128xf32> to vector<2x64xf32>
    %c4_61 = arith.constant 4 : index
    %c64_62 = arith.constant 64 : index
    %165 = vector.load %arg10[%c4_61, %c64_62] : memref<16x128xf32, #tpu.memory_space<vmem>>, vector<2x64xf32>
    tpu.vector_store %arg10[%c4_61, %c64_62], %164 {strides = array<i32>} : memref<16x128xf32, #tpu.memory_space<vmem>>, vector<2x64xf32>,
    %c12_63 = arith.constant 12 : index
    %c0_64 = arith.constant 0 : index
    %166 = vector.load %arg9[%c12_63, %c0_64] : memref<16x512xf32, #tpu.memory_space<vmem>>, vector<2x512xf32>
    %167 = arith.truncf %161 : vector<2x128xf32> to vector<2x128xbf16>
    %cst_65 = arith.constant dense<0.000000e+00> : vector<2x512xf32>
    %168 = tpu.matmul %167, %7, %cst_65 {dimension_numbers = #tpu.dot_dimension_numbers<[1], [0], [0], [1], [0, 0, 1, 1], [], []>} : vector<2x128xbf16>, vector<128x512xbf16>, vector<2x512xf32> -> vector<2x512xf32>
    %169 = arith.addf %166, %168 : vector<2x512xf32>
    %170 = vector.extract_strided_slice %169 {offsets = [0, 0], sizes = [2, 384], strides = [1, 1]} : vector<2x512xf32> to vector<2x384xf32>
    %cst_66 = arith.constant 5.000000e-01 : f32
    %171 = vector.broadcast %cst_66 : f32 to vector<2x384xf32>
    %172 = arith.mulf %171, %170 : vector<2x384xf32>
    %173 = math.tanh %172 : vector<2x384xf32>
    %cst_67 = arith.constant 5.000000e-01 : f32
    %174 = vector.broadcast %cst_67 : f32 to vector<2x384xf32>
    %175 = arith.mulf %174, %173 : vector<2x384xf32>
    %cst_68 = arith.constant 5.000000e-01 : f32
    %176 = vector.broadcast %cst_68 : f32 to vector<2x384xf32>
    %177 = arith.addf %175, %176 : vector<2x384xf32>
    %178 = vector.extract_strided_slice %169 {offsets = [0, 384], sizes = [2, 128], strides = [1, 1]} : vector<2x512xf32> to vector<2x128xf32>
    %179 = math.tanh %178 : vector<2x128xf32>
    %180 = vector.extract_strided_slice %177 {offsets = [0, 0], sizes = [2, 128], strides = [1, 1]} : vector<2x384xf32> to vector<2x128xf32>
    %181 = vector.extract_strided_slice %177 {offsets = [0, 128], sizes = [2, 128], strides = [1, 1]} : vector<2x384xf32> to vector<2x128xf32>
    %182 = vector.extract_strided_slice %177 {offsets = [0, 256], sizes = [2, 128], strides = [1, 1]} : vector<2x384xf32> to vector<2x128xf32>
    %183 = arith.mulf %181, %159 : vector<2x128xf32>
    %184 = arith.mulf %180, %179 : vector<2x128xf32>
    %185 = arith.addf %183, %184 : vector<2x128xf32>
    %186 = math.tanh %185 : vector<2x128xf32>
    %187 = arith.mulf %182, %186 : vector<2x128xf32>
    %188 = vector.extract_strided_slice %187 {offsets = [0, 0], sizes = [2, 64], strides = [1, 1]} : vector<2x128xf32> to vector<2x64xf32>
    %c12_69 = arith.constant 12 : index
    %c0_70 = arith.constant 0 : index
    %189 = vector.load %arg10[%c12_69, %c0_70] : memref<16x128xf32, #tpu.memory_space<vmem>>, vector<2x64xf32>
    tpu.vector_store %arg10[%c12_69, %c0_70], %188 {strides = array<i32>} : memref<16x128xf32, #tpu.memory_space<vmem>>, vector<2x64xf32>,
    %190 = vector.extract_strided_slice %187 {offsets = [0, 64], sizes = [2, 64], strides = [1, 1]} : vector<2x128xf32> to vector<2x64xf32>
    %c2_71 = arith.constant 2 : index
    %c64_72 = arith.constant 64 : index
    %191 = vector.load %arg10[%c2_71, %c64_72] : memref<16x128xf32, #tpu.memory_space<vmem>>, vector<2x64xf32>
    tpu.vector_store %arg10[%c2_71, %c64_72], %190 {strides = array<i32>} : memref<16x128xf32, #tpu.memory_space<vmem>>, vector<2x64xf32>,
    %c14_73 = arith.constant 14 : index
    %c0_74 = arith.constant 0 : index
    %192 = vector.load %arg9[%c14_73, %c0_74] : memref<16x512xf32, #tpu.memory_space<vmem>>, vector<2x512xf32>
    %193 = arith.truncf %187 : vector<2x128xf32> to vector<2x128xbf16>
    %cst_75 = arith.constant dense<0.000000e+00> : vector<2x512xf32>
    %194 = tpu.matmul %193, %7, %cst_75 {dimension_numbers = #tpu.dot_dimension_numbers<[1], [0], [0], [1], [0, 0, 1, 1], [], []>} : vector<2x128xbf16>, vector<128x512xbf16>, vector<2x512xf32> -> vector<2x512xf32>
    %195 = arith.addf %192, %194 : vector<2x512xf32>
    %196 = vector.extract_strided_slice %195 {offsets = [0, 0], sizes = [2, 384], strides = [1, 1]} : vector<2x512xf32> to vector<2x384xf32>
    %cst_76 = arith.constant 5.000000e-01 : f32
    %197 = vector.broadcast %cst_76 : f32 to vector<2x384xf32>
    %198 = arith.mulf %197, %196 : vector<2x384xf32>
    %199 = math.tanh %198 : vector<2x384xf32>
    %cst_77 = arith.constant 5.000000e-01 : f32
    %200 = vector.broadcast %cst_77 : f32 to vector<2x384xf32>
    %201 = arith.mulf %200, %199 : vector<2x384xf32>
    %cst_78 = arith.constant 5.000000e-01 : f32
    %202 = vector.broadcast %cst_78 : f32 to vector<2x384xf32>
    %203 = arith.addf %201, %202 : vector<2x384xf32>
    %204 = vector.extract_strided_slice %195 {offsets = [0, 384], sizes = [2, 128], strides = [1, 1]} : vector<2x512xf32> to vector<2x128xf32>
    %205 = math.tanh %204 : vector<2x128xf32>
    %206 = vector.extract_strided_slice %203 {offsets = [0, 0], sizes = [2, 128], strides = [1, 1]} : vector<2x384xf32> to vector<2x128xf32>
    %207 = vector.extract_strided_slice %203 {offsets = [0, 128], sizes = [2, 128], strides = [1, 1]} : vector<2x384xf32> to vector<2x128xf32>
    %208 = vector.extract_strided_slice %203 {offsets = [0, 256], sizes = [2, 128], strides = [1, 1]} : vector<2x384xf32> to vector<2x128xf32>
    %209 = arith.mulf %207, %185 : vector<2x128xf32>
    %210 = arith.mulf %206, %205 : vector<2x128xf32>
    %211 = arith.addf %209, %210 : vector<2x128xf32>
    %212 = math.tanh %211 : vector<2x128xf32>
    %213 = arith.mulf %208, %212 : vector<2x128xf32>
    %214 = vector.extract_strided_slice %213 {offsets = [0, 0], sizes = [2, 64], strides = [1, 1]} : vector<2x128xf32> to vector<2x64xf32>
    %c14_79 = arith.constant 14 : index
    %c0_80 = arith.constant 0 : index
    %215 = vector.load %arg10[%c14_79, %c0_80] : memref<16x128xf32, #tpu.memory_space<vmem>>, vector<2x64xf32>
    tpu.vector_store %arg10[%c14_79, %c0_80], %214 {strides = array<i32>} : memref<16x128xf32, #tpu.memory_space<vmem>>, vector<2x64xf32>,
    %216 = vector.extract_strided_slice %213 {offsets = [0, 64], sizes = [2, 64], strides = [1, 1]} : vector<2x128xf32> to vector<2x64xf32>
    %c0_81 = arith.constant 0 : index
    %c64_82 = arith.constant 64 : index
    %217 = vector.load %arg10[%c0_81, %c64_82] : memref<16x128xf32, #tpu.memory_space<vmem>>, vector<2x64xf32>
    tpu.vector_store %arg10[%c0_81, %c64_82], %216 {strides = array<i32>} : memref<16x128xf32, #tpu.memory_space<vmem>>, vector<2x64xf32>,
    %c0_83 = arith.constant 0 : index
    %c0_84 = arith.constant 0 : index
    %218 = vector.load %arg10[%c0_83, %c0_84] : memref<16x128xf32, #tpu.memory_space<vmem>>, vector<16x128xf32>
    %c0_85 = arith.constant 0 : index
    %c0_86 = arith.constant 0 : index
    %219 = vector.load %arg4[%c0_85, %c0_86] : memref<128x128xf32, #tpu.memory_space<vmem>>, vector<128x128xf32>
    %cst_87 = arith.constant dense<0.000000e+00> : vector<16x128xf32>
    %220 = tpu.matmul %218, %219, %cst_87 {dimension_numbers = #tpu.dot_dimension_numbers<[1], [0], [0], [1], [0, 0, 1, 1], [], []>} : vector<16x128xf32>, vector<128x128xf32>, vector<16x128xf32> -> vector<16x128xf32>
    %c0_88 = arith.constant 0 : index
    %c0_89 = arith.constant 0 : index
    %221 = vector.load %arg5[%c0_88, %c0_89] : memref<1x128xf32, #tpu.memory_space<vmem>>, vector<1x128xf32>
    %222 = vector.broadcast %221 : vector<1x128xf32> to vector<16x128xf32>
    %223 = arith.addf %220, %222 : vector<16x128xf32>
    %c0_90 = arith.constant 0 : index
    %c0_91 = arith.constant 0 : index
    %224 = vector.load %arg6[%c0_90, %c0_91] : memref<16x128xf32, #tpu.memory_space<vmem>>, vector<16x128xf32>
    tpu.vector_store %arg6[%c0_90, %c0_91], %223 {strides = array<i32>} : memref<16x128xf32, #tpu.memory_space<vmem>>, vector<16x128xf32>,
    return
  }
}

</mosaic_0001>

<llo_original>
// kernel: tpu_custom_call.1
$region0: #{tpu_custom_call.1}
  #allocation0 [shape = 'u32[]', space=smem, size = 0x4, offset = 0x4, fixed_abs, tag = 'smem constant byte address 0x4 - core index']
  #allocation1 [shape = 'u32[72,128]{1,0:T(1,128)}', space=vmem, size = 0x9000, scoped, tag = 'internal scratch']
  #allocation2 [shape = 'bf16[128,512]{1,0:T(8,128)(2,1)}', space=vmem, size = 0x20000, scoped, tag = 'scratch operand']
  #allocation3 [shape = 's32[1]{0}', space=sflag, size = 0x4, scoped, tag = 'scratch operand']
  #allocation4 [shape = 'f32[16,512]{1,0:T(8,128)}', space=vmem, size = 0x8000, scoped, tag = 'scratch operand']
  #allocation5 [shape = 'f32[16,128]{1,0:T(8,128)}', space=vmem, size = 0x2000, scoped, tag = 'scratch operand']
  #allocation15 [shape = 's32[]', space=sflag, size = 0x4, offset = 0, fixed_abs, tag = 'sflag constant byte address 0x0 - dummy sync flag']
  #allocation16 [shape = 's32[]', space=sflag, size = 0x4, offset = 0, fixed_abs, tag = 'sflag constant byte address 0x0 - dummy sync flag']
  #allocation17 [shape = 'u32[]', space=smem, size = 0x4, offset = 0x44, fixed_abs, tag = 'smem constant byte address 0x44 - assertion arg 0']
  #allocation18 [shape = 'u32[]', space=smem, size = 0x4, offset = 0x48, fixed_abs, tag = 'smem constant byte address 0x48 - assertion arg 1']
  %s0 = inlined_call_operand.hbm [shape: bf16[16,28], index: 0, kind: input, shape index: {}]
  %s1 = inlined_call_operand.hbm [shape: bf16[28,512], index: 1, kind: input, shape index: {}]
  %s2 = inlined_call_operand.hbm [shape: f32[1,512], index: 2, kind: input, shape index: {}]
  %s3 = inlined_call_operand.hbm [shape: bf16[128,512], index: 3, kind: input, shape index: {}]
  %s4 = inlined_call_operand.hbm [shape: f32[128,128], index: 4, kind: input, shape index: {}]
  %s5 = inlined_call_operand.vmem [shape: f32[1,128], index: 5, kind: input, shape index: {}]
  %s6 = inlined_call_operand.hbm [shape: f32[16,128], index: 6, kind: output, shape index: {}]
  %s7 = sld [smem:[#allocation0]]
  $region50: #{tpu_custom_call.1} parent=0
    _
  %s9 = ssub.s32 1, %s7
  %s10 = scalar_select 0, %s9, %s7
  $region1: #{tpu_custom_call.1} parent=0
    #allocation6 [shape = 'u8[4096]{0}', space=vmem, size = 0x1000, scoped, tag = 'input window, operand 0, single buffered']
    #allocation7 [shape = 's32[1]{0}', space=sflag, size = 0x4, scoped, tag = 'scoped memory for tpu_custom_call.1']
    #allocation8 [shape = 's32[1]{0}', space=sflag, size = 0x4, scoped, tag = 'scoped memory for tpu_custom_call.1']
    #allocation9 [shape = 'u8[32768]{0}', space=vmem, size = 0x8000, scoped, tag = 'input window, operand 1, single buffered']
    #allocation10 [shape = 's32[1]{0}', space=sflag, size = 0x4, scoped, tag = 'scoped memory for tpu_custom_call.1']
    #allocation11 [shape = 'u8[2048]{0}', space=vmem, size = 0x800, scoped, tag = 'input window, operand 2, single buffered']
    #allocation12 [shape = 'u8[65536]{0}', space=vmem, size = 0x10000, scoped, tag = 'input window, operand 4, single buffered']
    #allocation13 [shape = 's32[1]{0}', space=sflag, size = 0x4, scoped, tag = 'scoped memory for tpu_custom_call.1']
    #allocation14 [shape = 'u8[8192]{0}', space=vmem, size = 0x2000, scoped, tag = 'output window, operand 0, single buffered']
    %11 = vsyncpa [#allocation7], 0
    %12 = vsyncpa [#allocation10], 0
    %13 = vsyncpa [#allocation13], 0
    %14 = vsyncpa [#allocation8], 0
    // Predicated region
    $region2: #{tpu_custom_call.1} parent=1 // pred_check
      _
    $region3: #{tpu_custom_call.1} parent=1 // pred_check_branch
      %16 = sbr.rel (0) target = $region5
    $region4: #{tpu_custom_call.1} parent=1 // pred_region
      %18 = vsyncadd [#allocation7], 0
      %s19 = sshll.u32 %s0, 4
      %s20 = int_to_ptr.hbm [resolvable:$true] %s19
      %s21 = sshll.u32 [#allocation6], 4
      %s22 = int_to_ptr.vmem [resolvable:$true] %s21
      %27 = dma.hbm_to_vmem [thread:$0]  %s20, 128, %s22, [#allocation7], 64, 64, 4
    $region5: #{tpu_custom_call.1} parent=1 // pred_fallthru
      _
    // Predicated region
    $region6: #{tpu_custom_call.1} parent=1 // pred_check
      _
    $region7: #{tpu_custom_call.1} parent=1 // pred_check_branch
      %29 = sbr.rel (0) target = $region9
    $region8: #{tpu_custom_call.1} parent=1 // pred_region
      %31 = vsyncadd [#allocation10], 0
      %s32 = sshll.u32 %s1, 4
      %s33 = int_to_ptr.hbm [resolvable:$true] %s32
      %s34 = sshll.u32 [#allocation9], 4
      %s35 = int_to_ptr.vmem [resolvable:$true] %s34
      %40 = dma.hbm_to_vmem [thread:$0]  %s33, 1024, %s35, [#allocation10], 256, 256, 16
    $region9: #{tpu_custom_call.1} parent=1 // pred_fallthru
      _
    // Predicated region
    $region10: #{tpu_custom_call.1} parent=1 // pred_check
      _
    $region11: #{tpu_custom_call.1} parent=1 // pred_check_branch
      %42 = sbr.rel (0) target = $region13
    $region12: #{tpu_custom_call.1} parent=1 // pred_region
      %44 = vsyncadd [#allocation10], 0
      %s46 = sshll.u32 %s2, 4
      %s47 = int_to_ptr.hbm [resolvable:$true] %s46
      %s48 = sshll.u32 [#allocation11], 4
      %s49 = int_to_ptr.vmem [resolvable:$true] %s48
      %51 = dma.hbm_to_vmem [thread:$0]  %s47, 64, %s49, [#allocation10]
    $region13: #{tpu_custom_call.1} parent=1 // pred_fallthru
      _
    // Predicated region
    $region14: #{tpu_custom_call.1} parent=1 // pred_check
      _
    $region15: #{tpu_custom_call.1} parent=1 // pred_check_branch
      %53 = sbr.rel (0) target = $region17
    $region16: #{tpu_custom_call.1} parent=1 // pred_region
      %55 = vsyncadd [#allocation13], 0
      %s56 = sshll.u32 %s4, 4
      %s57 = int_to_ptr.hbm [resolvable:$true] %s56
      %s58 = sshll.u32 [#allocation12], 4
      %s59 = int_to_ptr.vmem [resolvable:$true] %s58
      %64 = dma.hbm_to_vmem [thread:$0]  %s57, 2048, %s59, [#allocation13], 128, 128, 8
    $region17: #{tpu_custom_call.1} parent=1 // pred_fallthru
      _
    // Predicated region
    $region18: #{tpu_custom_call.1} parent=1 // pred_check
      _
    $region19: #{tpu_custom_call.1} parent=1 // pred_check_branch
      %66 = sbr.rel (0) target = $region21
    $region20: #{tpu_custom_call.1} parent=1 // pred_region
      _
    $region21: #{tpu_custom_call.1} parent=1 // pred_fallthru
      _
    // Predicated region
    $region22: #{tpu_custom_call.1} parent=1 // pred_check
      _
    $region23: #{tpu_custom_call.1} parent=1 // pred_check_branch
      %68 = sbr.rel (0) target = $region25
    $region24: #{tpu_custom_call.1} parent=1 // pred_region
      %70 = dma.done [#allocation7], 128
    $region25: #{tpu_custom_call.1} parent=1 // pred_fallthru
      _
    // Predicated region
    $region26: #{tpu_custom_call.1} parent=1 // pred_check
      _
    $region27: #{tpu_custom_call.1} parent=1 // pred_check_branch
      %72 = sbr.rel (0) target = $region29
    $region28: #{tpu_custom_call.1} parent=1 // pred_region
      %74 = dma.done [#allocation10], 1024
    $region29: #{tpu_custom_call.1} parent=1 // pred_fallthru
      _
    // Predicated region
    $region30: #{tpu_custom_call.1} parent=1 // pred_check
      _
    $region31: #{tpu_custom_call.1} parent=1 // pred_check_branch
      %76 = sbr.rel (0) target = $region33
    $region32: #{tpu_custom_call.1} parent=1 // pred_region
      %78 = dma.done [#allocation10], 64
    $region33: #{tpu_custom_call.1} parent=1 // pred_fallthru
      _
    // Predicated region
    $region34: #{tpu_custom_call.1} parent=1 // pred_check
      _
    $region35: #{tpu_custom_call.1} parent=1 // pred_check_branch
      %80 = sbr.rel (0) target = $region37
    $region36: #{tpu_custom_call.1} parent=1 // pred_region
      %82 = dma.done [#allocation13], 2048
    $region37: #{tpu_custom_call.1} parent=1 // pred_fallthru
      _
    // Predicated region
    $region38: #{tpu_custom_call.1} parent=1 // pred_check
      _
    $region39: #{tpu_custom_call.1} parent=1 // pred_check_branch
      %85 = sbr.rel target = $region41
    $region40: #{tpu_custom_call.1} parent=1 // pred_region
      %86 = sst [smem:[#allocation17]] [#allocation16]
      %87 = sst [smem:[#allocation18]] [#allocation15]
    $region41: #{tpu_custom_call.1} parent=1 // pred_fallthru
      _
    %89 = shalt.err (0)
    %s91 = sshll.u32 %s3, 4
    %s92 = int_to_ptr.hbm [resolvable:$true] %s91
    %s93 = sshll.u32 [#allocation2], 4
    %s94 = int_to_ptr.vmem [resolvable:$true] %s93
    %96 = dma.hbm_to_vmem [thread:$0]  %s92, 4096, %s94, [#allocation3]
    %v97 = vld [vmem:[#allocation6] sm:$0xf]
    %v98 = vld [vmem:[#allocation6 + $0x4] sm:$0xf]
    %v99 = vld [vmem:[#allocation9] sm:$0xff]
    %v100 = vld [vmem:[#allocation9 + $0x8] sm:$0xff]
    %v101 = vld [vmem:[#allocation9 + $0x10] sm:$0xff]
    %v102 = vld [vmem:[#allocation9 + $0x18] sm:$0xff]
    %v103 = vld [vmem:[#allocation9 + $0x20] sm:$0xff]
    %v104 = vld [vmem:[#allocation9 + $0x28] sm:$0xff]
    %v105 = vld [vmem:[#allocation9 + $0x30] sm:$0x33]
    %v106 = vld [vmem:[#allocation9 + $0x38] sm:$0x33]
    %v107 = vld [vmem:[#allocation11] sm:$0xf]
    %v109 = vperm.slane %v107, 0
    %v110 = vperm.slane %v107, 1
    %v111 = vperm.slane %v107, 2
    %v112 = vperm.slane %v107, 3
    %v119 = vunpack.c.l.b16 %v97
    %v120 = vunpack.c.l.b16 %v98
    %v121 = vpack.c.b16 %v120, %v119
    %v130 = vunpack.c.l.b16 %v99
    %v131 = vunpack.c.h.b16 %v99
    %v132 = vunpack.c.l.b16 %v100
    %v133 = vunpack.c.h.b16 %v100
    %v134 = vunpack.c.l.b16 %v101
    %v135 = vunpack.c.h.b16 %v101
    %v136 = vunpack.c.l.b16 %v102
    %v137 = vunpack.c.h.b16 %v102
    %v138 = vunpack.c.l.b16 %v103
    %v139 = vunpack.c.h.b16 %v103
    %v140 = vunpack.c.l.b16 %v104
    %v141 = vunpack.c.h.b16 %v104
    %v142 = vunpack.c.l.b16 %v105
    %v143 = vunpack.c.h.b16 %v105
    %v144 = vunpack.c.l.b16 %v106
    %v145 = vunpack.c.h.b16 %v106
    %v146 = vpack.c.b16 %v134, %v130
    %v147 = vpack.c.b16 %v135, %v131
    %v148 = vpack.c.b16 %v136, %v132
    %v149 = vpack.c.b16 %v137, %v133
    %v150 = vpack.c.b16 %v142, %v138
    %v151 = vpack.c.b16 %v143, %v139
    %v152 = vpack.c.b16 %v144, %v140
    %v153 = vpack.c.b16 %v145, %v141
    %vm158 = vcmask 228352
    %v160 = vsel %vm158, %v121, 0
    %vm162 = vcmask 1045504
    %v164 = vsel %vm162, %v150, 0
    %v167 = vsel %vm162, %v151, 0
    %v170 = vsel %vm162, %v152, 0
    %v173 = vsel %vm162, %v153, 0
    %175 = vmatpush.bf16.msra.mxu0 0
    %176 = vmatpush.bf16.msra.mxu0 0
    %177 = vmatpush.bf16.msra.mxu0 0
    %178 = vmatpush.bf16.msra.mxu0 0
    %179 = vmatpush.bf16.msra.mxu0 0
    %180 = vmatpush.bf16.msra.mxu0 0
    %181 = vmatpush.bf16.msra.mxu0 %v164
    %182 = vmatpush.bf16.msra.mxu0 %v146
    %183 = vmatmul.bf16.gmra.mxu0 %v160
    %v184 = vpop.f32.mrf.mxu0
    %v185 = vadd.f32 %v109, %v184
    %v186 = vpop.f32.mrf.mxu0
    %v187 = vadd.f32 %v109, %v186
    %188 = vdwg.mxu0
    %189 = vmatpush.bf16.msra.mxu0 0
    %190 = vmatpush.bf16.msra.mxu0 0
    %191 = vmatpush.bf16.msra.mxu0 0
    %192 = vmatpush.bf16.msra.mxu0 0
    %193 = vmatpush.bf16.msra.mxu0 0
    %194 = vmatpush.bf16.msra.mxu0 0
    %195 = vmatpush.bf16.msra.mxu0 %v167
    %196 = vmatpush.bf16.msra.mxu0 %v147
    %197 = vmatmul.bf16.gmra.mxu0 %v160
    %v198 = vpop.f32.mrf.mxu0
    %v199 = vadd.f32 %v110, %v198
    %v200 = vpop.f32.mrf.mxu0
    %v201 = vadd.f32 %v110, %v200
    %202 = vdwg.mxu0
    %203 = vmatpush.bf16.msra.mxu0 0
    %204 = vmatpush.bf16.msra.mxu0 0
    %205 = vmatpush.bf16.msra.mxu0 0
    %206 = vmatpush.bf16.msra.mxu0 0
    %207 = vmatpush.bf16.msra.mxu0 0
    %208 = vmatpush.bf16.msra.mxu0 0
    %209 = vmatpush.bf16.msra.mxu0 %v170
    %210 = vmatpush.bf16.msra.mxu0 %v148
    %211 = vmatmul.bf16.gmra.mxu0 %v160
    %v212 = vpop.f32.mrf.mxu0
    %v213 = vadd.f32 %v111, %v212
    %v214 = vpop.f32.mrf.mxu0
    %v215 = vadd.f32 %v111, %v214
    %216 = vdwg.mxu0
    %217 = vmatpush.bf16.msra.mxu0 0
    %218 = vmatpush.bf16.msra.mxu0 0
    %219 = vmatpush.bf16.msra.mxu0 0
    %220 = vmatpush.bf16.msra.mxu0 0
    %221 = vmatpush.bf16.msra.mxu0 0
    %222 = vmatpush.bf16.msra.mxu0 0
    %223 = vmatpush.bf16.msra.mxu0 %v173
    %224 = vmatpush.bf16.msra.mxu0 %v149
    %225 = vmatmul.bf16.gmra.mxu0 %v160
    %v226 = vpop.f32.mrf.mxu0
    %v227 = vadd.f32 %v112, %v226
    %v228 = vpop.f32.mrf.mxu0
    %v229 = vadd.f32 %v112, %v228
    %230 = vdwg.mxu0
    %231 = vst [vmem:[#allocation4] sm:$0xff] %v185
    %232 = vst [vmem:[#allocation4 + $0x8] sm:$0xff] %v199
    %233 = vst [vmem:[#allocation4 + $0x10] sm:$0xff] %v213
    %234 = vst [vmem:[#allocation4 + $0x18] sm:$0xff] %v227
    %235 = vst [vmem:[#allocation4 + $0x20] sm:$0xff] %v187
    %236 = vst [vmem:[#allocation4 + $0x28] sm:$0xff] %v201
    %237 = vst [vmem:[#allocation4 + $0x30] sm:$0xff] %v215
    %238 = vst [vmem:[#allocation4 + $0x38] sm:$0xff] %v229
    %s239 = smul.u32 4, 16
    %s240 = smul.u32 %s239, 4
    %s241 = sshll.u32 %s240, 4
    %242 = dma.done [#allocation3], %s241
    %v243 = vld [vmem:[#allocation2] sm:$0xff]
    %v244 = vld [vmem:[#allocation2 + $0x8] sm:$0xff]
    %v245 = vld [vmem:[#allocation2 + $0x10] sm:$0xff]
    %v246 = vld [vmem:[#allocation2 + $0x18] sm:$0xff]
    %v247 = vld [vmem:[#allocation2 + $0x20] sm:$0xff]
    %v248 = vld [vmem:[#allocation2 + $0x28] sm:$0xff]
    %v249 = vld [vmem:[#allocation2 + $0x30] sm:$0xff]
    %v250 = vld [vmem:[#allocation2 + $0x38] sm:$0xff]
    %v251 = vld [vmem:[#allocation2 + $0x40] sm:$0xff]
    %v252 = vld [vmem:[#allocation2 + $0x48] sm:$0xff]
    %v253 = vld [vmem:[#allocation2 + $0x50] sm:$0xff]
    %v254 = vld [vmem:[#allocation2 + $0x58] sm:$0xff]
    %v255 = vld [vmem:[#allocation2 + $0x60] sm:$0xff]
    %v256 = vld [vmem:[#allocation2 + $0x68] sm:$0xff]
    %v257 = vld [vmem:[#allocation2 + $0x70] sm:$0xff]
    %v258 = vld [vmem:[#allocation2 + $0x78] sm:$0xff]
    %v259 = vld [vmem:[#allocation2 + $0x80] sm:$0xff]
    %v260 = vld [vmem:[#allocation2 + $0x88] sm:$0xff]
    %v261 = vld [vmem:[#allocation2 + $0x90] sm:$0xff]
    %v262 = vld [vmem:[#allocation2 + $0x98] sm:$0xff]
    %v263 = vld [vmem:[#allocation2 + $0xa0] sm:$0xff]
    %v264 = vld [vmem:[#allocation2 + $0xa8] sm:$0xff]
    %v265 = vld [vmem:[#allocation2 + $0xb0] sm:$0xff]
    %v266 = vld [vmem:[#allocation2 + $0xb8] sm:$0xff]
    %v267 = vld [vmem:[#allocation2 + $0xc0] sm:$0xff]
    %v268 = vld [vmem:[#allocation2 + $0xc8] sm:$0xff]
    %v269 = vld [vmem:[#allocation2 + $0xd0] sm:$0xff]
    %v270 = vld [vmem:[#allocation2 + $0xd8] sm:$0xff]
    %v271 = vld [vmem:[#allocation2 + $0xe0] sm:$0xff]
    %v272 = vld [vmem:[#allocation2 + $0xe8] sm:$0xff]
    %v273 = vld [vmem:[#allocation2 + $0xf0] sm:$0xff]
    %v274 = vld [vmem:[#allocation2 + $0xf8] sm:$0xff]
    %v275 = vld [vmem:[#allocation4] sm:$0x3]
    %v276 = vld [vmem:[#allocation4 + $0x8] sm:$0x3]
    %v277 = vld [vmem:[#allocation4 + $0x10] sm:$0x3]
    %v278 = vld [vmem:[#allocation4 + $0x18] sm:$0x3]
    %v311 = vunpack.c.l.b16 %v243
    %v312 = vunpack.c.h.b16 %v243
    %v313 = vunpack.c.l.b16 %v244
    %v314 = vunpack.c.h.b16 %v244
    %v315 = vunpack.c.l.b16 %v245
    %v316 = vunpack.c.h.b16 %v245
    %v317 = vunpack.c.l.b16 %v246
    %v318 = vunpack.c.h.b16 %v246
    %v319 = vunpack.c.l.b16 %v247
    %v320 = vunpack.c.h.b16 %v247
    %v321 = vunpack.c.l.b16 %v248
    %v322 = vunpack.c.h.b16 %v248
    %v323 = vunpack.c.l.b16 %v249
    %v324 = vunpack.c.h.b16 %v249
    %v325 = vunpack.c.l.b16 %v250
    %v326 = vunpack.c.h.b16 %v250
    %v327 = vunpack.c.l.b16 %v251
    %v328 = vunpack.c.h.b16 %v251
    %v329 = vunpack.c.l.b16 %v252
    %v330 = vunpack.c.h.b16 %v252
    %v331 = vunpack.c.l.b16 %v253
    %v332 = vunpack.c.h.b16 %v253
    %v333 = vunpack.c.l.b16 %v254
    %v334 = vunpack.c.h.b16 %v254
    %v335 = vunpack.c.l.b16 %v255
    %v336 = vunpack.c.h.b16 %v255
    %v337 = vunpack.c.l.b16 %v256
    %v338 = vunpack.c.h.b16 %v256
    %v339 = vunpack.c.l.b16 %v257
    %v340 = vunpack.c.h.b16 %v257
    %v341 = vunpack.c.l.b16 %v258
    %v342 = vunpack.c.h.b16 %v258
    %v343 = vunpack.c.l.b16 %v259
    %v344 = vunpack.c.h.b16 %v259
    %v345 = vunpack.c.l.b16 %v260
    %v346 = vunpack.c.h.b16 %v260
    %v347 = vunpack.c.l.b16 %v261
    %v348 = vunpack.c.h.b16 %v261
    %v349 = vunpack.c.l.b16 %v262
    %v350 = vunpack.c.h.b16 %v262
    %v351 = vunpack.c.l.b16 %v263
    %v352 = vunpack.c.h.b16 %v263
    %v353 = vunpack.c.l.b16 %v264
    %v354 = vunpack.c.h.b16 %v264
    %v355 = vunpack.c.l.b16 %v265
    %v356 = vunpack.c.h.b16 %v265
    %v357 = vunpack.c.l.b16 %v266
    %v358 = vunpack.c.h.b16 %v266
    %v359 = vunpack.c.l.b16 %v267
    %v360 = vunpack.c.h.b16 %v267
    %v361 = vunpack.c.l.b16 %v268
    %v362 = vunpack.c.h.b16 %v268
    %v363 = vunpack.c.l.b16 %v269
    %v364 = vunpack.c.h.b16 %v269
    %v365 = vunpack.c.l.b16 %v270
    %v366 = vunpack.c.h.b16 %v270
    %v367 = vunpack.c.l.b16 %v271
    %v368 = vunpack.c.h.b16 %v271
    %v369 = vunpack.c.l.b16 %v272
    %v370 = vunpack.c.h.b16 %v272
    %v371 = vunpack.c.l.b16 %v273
    %v372 = vunpack.c.h.b16 %v273
    %v373 = vunpack.c.l.b16 %v274
    %v374 = vunpack.c.h.b16 %v274
    %v375 = vpack.c.b16 %v315, %v311
    %v376 = vpack.c.b16 %v316, %v312
    %v377 = vpack.c.b16 %v317, %v313
    %v378 = vpack.c.b16 %v318, %v314
    %v379 = vpack.c.b16 %v323, %v319
    %v380 = vpack.c.b16 %v324, %v320
    %v381 = vpack.c.b16 %v325, %v321
    %v382 = vpack.c.b16 %v326, %v322
    %v383 = vpack.c.b16 %v331, %v327
    %v384 = vpack.c.b16 %v332, %v328
    %v385 = vpack.c.b16 %v333, %v329
    %v386 = vpack.c.b16 %v334, %v330
    %v387 = vpack.c.b16 %v339, %v335
    %v388 = vpack.c.b16 %v340, %v336
    %v389 = vpack.c.b16 %v341, %v337
    %v390 = vpack.c.b16 %v342, %v338
    %v391 = vpack.c.b16 %v347, %v343
    %v392 = vpack.c.b16 %v348, %v344
    %v393 = vpack.c.b16 %v349, %v345
    %v394 = vpack.c.b16 %v350, %v346
    %v395 = vpack.c.b16 %v355, %v351
    %v396 = vpack.c.b16 %v356, %v352
    %v397 = vpack.c.b16 %v357, %v353
    %v398 = vpack.c.b16 %v358, %v354
    %v399 = vpack.c.b16 %v363, %v359
    %v400 = vpack.c.b16 %v364, %v360
    %v401 = vpack.c.b16 %v365, %v361
    %v402 = vpack.c.b16 %v366, %v362
    %v403 = vpack.c.b16 %v371, %v367
    %v404 = vpack.c.b16 %v372, %v368
    %v405 = vpack.c.b16 %v373, %v369
    %v406 = vpack.c.b16 %v374, %v370
    %439 = vmatpush.bf16.msra.mxu0 %v403
    %440 = vmatpush.bf16.msra.mxu0 %v399
    %441 = vmatpush.bf16.msra.mxu0 %v395
    %442 = vmatpush.bf16.msra.mxu0 %v391
    %443 = vmatpush.bf16.msra.mxu0 %v387
    %444 = vmatpush.bf16.msra.mxu0 %v383
    %445 = vmatpush.bf16.msra.mxu0 %v379
    %446 = vmatpush.bf16.msra.mxu0 %v375
    %447 = vmatmul.bf16.gmra.mxu0 0
    %v448 = vpop.f32.mrf.mxu0
    %v449 = vadd.f32 0.0, %v448
    %v450 = vpop.f32.mrf.mxu0
    %451 = vdwg.mxu0
    %452 = vmatpush.bf16.msra.mxu0 %v404
    %453 = vmatpush.bf16.msra.mxu0 %v400
    %454 = vmatpush.bf16.msra.mxu0 %v396
    %455 = vmatpush.bf16.msra.mxu0 %v392
    %456 = vmatpush.bf16.msra.mxu0 %v388
    %457 = vmatpush.bf16.msra.mxu0 %v384
    %458 = vmatpush.bf16.msra.mxu0 %v380
    %459 = vmatpush.bf16.msra.mxu0 %v376
    %460 = vmatmul.bf16.gmra.mxu0 0
    %v461 = vpop.f32.mrf.mxu0
    %v462 = vadd.f32 0.0, %v461
    %v463 = vpop.f32.mrf.mxu0
    %464 = vdwg.mxu0
    %465 = vmatpush.bf16.msra.mxu0 %v405
    %466 = vmatpush.bf16.msra.mxu0 %v401
    %467 = vmatpush.bf16.msra.mxu0 %v397
    %468 = vmatpush.bf16.msra.mxu0 %v393
    %469 = vmatpush.bf16.msra.mxu0 %v389
    %470 = vmatpush.bf16.msra.mxu0 %v385
    %471 = vmatpush.bf16.msra.mxu0 %v381
    %472 = vmatpush.bf16.msra.mxu0 %v377
    %473 = vmatmul.bf16.gmra.mxu0 0
    %v474 = vpop.f32.mrf.mxu0
    %v475 = vadd.f32 0.0, %v474
    %v476 = vpop.f32.mrf.mxu0
    %477 = vdwg.mxu0
    %478 = vmatpush.bf16.msra.mxu0 %v406
    %479 = vmatpush.bf16.msra.mxu0 %v402
    %480 = vmatpush.bf16.msra.mxu0 %v398
    %481 = vmatpush.bf16.msra.mxu0 %v394
    %482 = vmatpush.bf16.msra.mxu0 %v390
    %483 = vmatpush.bf16.msra.mxu0 %v386
    %484 = vmatpush.bf16.msra.mxu0 %v382
    %485 = vmatpush.bf16.msra.mxu0 %v378
    %486 = vmatmul.bf16.gmra.mxu0 0
    %v487 = vpop.f32.mrf.mxu0
    %v488 = vadd.f32 0.0, %v487
    %v489 = vpop.f32.mrf.mxu0
    %490 = vdwg.mxu0
    %v491 = vadd.f32 %v275, %v449
    %v492 = vadd.f32 %v276, %v462
    %v493 = vadd.f32 %v277, %v475
    %v494 = vadd.f32 %v278, %v488
    %v495 = vmul.f32 %v491, 0.5
    %v496 = vmul.f32 %v492, 0.5
    %v497 = vmul.f32 %v493, 0.5
    %v498 = vtanh.pop %v495
    %v499 = vtanh.pop %v496
    %v500 = vtanh.pop %v497
    %v501 = vmul.f32 %v498, 0.5
    %v502 = vmul.f32 %v499, 0.5
    %v503 = vmul.f32 %v500, 0.5
    %v504 = vadd.f32 %v501, 0.5
    %v505 = vadd.f32 %v502, 0.5
    %v506 = vadd.f32 %v503, 0.5
    %v507 = vtanh.pop %v494
    %v508 = vmul.f32 %v505, 0.0
    %v509 = vmul.f32 %v504, %v507
    %v510 = vadd.f32 %v508, %v509
    %v511 = vtanh.pop %v510
    %v512 = vmul.f32 %v506, %v511
    %vm513 = vcmask 517120
    %514 = vst.msk [vmem:[#allocation5] sm:$0x3] %vm513, %v512
    %vm515 = vcmask 1041920
    %516 = vst.msk [vmem:[#allocation5 + $0xe] sm:$0x3] %vm515, %v512
    %v517 = vld [vmem:[#allocation4] sm:$0xc]
    %v518 = vld [vmem:[#allocation4 + $0x8] sm:$0xc]
    %v519 = vld [vmem:[#allocation4 + $0x10] sm:$0xc]
    %v520 = vld [vmem:[#allocation4 + $0x18] sm:$0xc]
    %v521 = vpack.c.bf16 %v512, %v512
    %522 = vmatpush.bf16.msra.mxu0 %v403
    %523 = vmatpush.bf16.msra.mxu0 %v399
    %524 = vmatpush.bf16.msra.mxu0 %v395
    %525 = vmatpush.bf16.msra.mxu0 %v391
    %526 = vmatpush.bf16.msra.mxu0 %v387
    %527 = vmatpush.bf16.msra.mxu0 %v383
    %528 = vmatpush.bf16.msra.mxu0 %v379
    %529 = vmatpush.bf16.msra.mxu0 %v375
    %530 = vmatmul.bf16.gmra.mxu0 %v521
    %v531 = vpop.f32.mrf.mxu0
    %v532 = vadd.f32 0.0, %v531
    %v533 = vpop.f32.mrf.mxu0
    %534 = vdwg.mxu0
    %535 = vmatpush.bf16.msra.mxu0 %v404
    %536 = vmatpush.bf16.msra.mxu0 %v400
    %537 = vmatpush.bf16.msra.mxu0 %v396
    %538 = vmatpush.bf16.msra.mxu0 %v392
    %539 = vmatpush.bf16.msra.mxu0 %v388
    %540 = vmatpush.bf16.msra.mxu0 %v384
    %541 = vmatpush.bf16.msra.mxu0 %v380
    %542 = vmatpush.bf16.msra.mxu0 %v376
    %543 = vmatmul.bf16.gmra.mxu0 %v521
    %v544 = vpop.f32.mrf.mxu0
    %v545 = vadd.f32 0.0, %v544
    %v546 = vpop.f32.mrf.mxu0
    %547 = vdwg.mxu0
    %548 = vmatpush.bf16.msra.mxu0 %v405
    %549 = vmatpush.bf16.msra.mxu0 %v401
    %550 = vmatpush.bf16.msra.mxu0 %v397
    %551 = vmatpush.bf16.msra.mxu0 %v393
    %552 = vmatpush.bf16.msra.mxu0 %v389
    %553 = vmatpush.bf16.msra.mxu0 %v385
    %554 = vmatpush.bf16.msra.mxu0 %v381
    %555 = vmatpush.bf16.msra.mxu0 %v377
    %556 = vmatmul.bf16.gmra.mxu0 %v521
    %v557 = vpop.f32.mrf.mxu0
    %v558 = vadd.f32 0.0, %v557
    %v559 = vpop.f32.mrf.mxu0
    %560 = vdwg.mxu0
    %561 = vmatpush.bf16.msra.mxu0 %v406
    %562 = vmatpush.bf16.msra.mxu0 %v402
    %563 = vmatpush.bf16.msra.mxu0 %v398
    %564 = vmatpush.bf16.msra.mxu0 %v394
    %565 = vmatpush.bf16.msra.mxu0 %v390
    %566 = vmatpush.bf16.msra.mxu0 %v386
    %567 = vmatpush.bf16.msra.mxu0 %v382
    %568 = vmatpush.bf16.msra.mxu0 %v378
    %569 = vmatmul.bf16.gmra.mxu0 %v521
    %v570 = vpop.f32.mrf.mxu0
    %v571 = vadd.f32 0.0, %v570
    %v572 = vpop.f32.mrf.mxu0
    %573 = vdwg.mxu0
    %v578 = vrot.slane %v532, 6
    %v579 = vrot.slane %v545, 6
    %v580 = vrot.slane %v558, 6
    %v581 = vrot.slane %v571, 6
    %v586 = vadd.f32 %v517, %v578
    %v587 = vadd.f32 %v518, %v579
    %v588 = vadd.f32 %v519, %v580
    %v589 = vadd.f32 %v520, %v581
    %v590 = vmul.f32 %v586, 0.5
    %v591 = vmul.f32 %v587, 0.5
    %v592 = vmul.f32 %v588, 0.5
    %v593 = vtanh.pop %v590
    %v594 = vtanh.pop %v591
    %v595 = vtanh.pop %v592
    %v596 = vmul.f32 %v593, 0.5
    %v597 = vmul.f32 %v594, 0.5
    %v598 = vmul.f32 %v595, 0.5
    %v599 = vadd.f32 %v596, 0.5
    %v600 = vadd.f32 %v597, 0.5
    %v601 = vadd.f32 %v598, 0.5
    %v602 = vtanh.pop %v589
    %v604 = vrot.slane %v510, 6
    %v606 = vmul.f32 %v600, %v604
    %v607 = vmul.f32 %v599, %v602
    %v608 = vadd.f32 %v606, %v607
    %v609 = vtanh.pop %v608
    %v610 = vmul.f32 %v601, %v609
    %vm611 = vcmask 519170
    %612 = vst.msk [vmem:[#allocation5] sm:$0xc] %vm611, %v610
    %vm613 = vcmask 1043970
    %614 = vst.msk [vmem:[#allocation5 + $0xa] sm:$0xc] %vm613, %v610
    %v615 = vld [vmem:[#allocation4] sm:$0x30]
    %v616 = vld [vmem:[#allocation4 + $0x8] sm:$0x30]
    %v617 = vld [vmem:[#allocation4 + $0x10] sm:$0x30]
    %v618 = vld [vmem:[#allocation4 + $0x18] sm:$0x30]
    %v619 = vpack.c.bf16 %v610, %v610
    %v621 = vrot.slane %v619, 1
    %623 = vmatpush.bf16.msra.mxu0 %v403
    %624 = vmatpush.bf16.msra.mxu0 %v399
    %625 = vmatpush.bf16.msra.mxu0 %v395
    %626 = vmatpush.bf16.msra.mxu0 %v391
    %627 = vmatpush.bf16.msra.mxu0 %v387
    %628 = vmatpush.bf16.msra.mxu0 %v383
    %629 = vmatpush.bf16.msra.mxu0 %v379
    %630 = vmatpush.bf16.msra.mxu0 %v375
    %631 = vmatmul.bf16.gmra.mxu0 %v621
    %v632 = vpop.f32.mrf.mxu0
    %v633 = vadd.f32 0.0, %v632
    %v634 = vpop.f32.mrf.mxu0
    %635 = vdwg.mxu0
    %636 = vmatpush.bf16.msra.mxu0 %v404
    %637 = vmatpush.bf16.msra.mxu0 %v400
    %638 = vmatpush.bf16.msra.mxu0 %v396
    %639 = vmatpush.bf16.msra.mxu0 %v392
    %640 = vmatpush.bf16.msra.mxu0 %v388
    %641 = vmatpush.bf16.msra.mxu0 %v384
    %642 = vmatpush.bf16.msra.mxu0 %v380
    %643 = vmatpush.bf16.msra.mxu0 %v376
    %644 = vmatmul.bf16.gmra.mxu0 %v621
    %v645 = vpop.f32.mrf.mxu0
    %v646 = vadd.f32 0.0, %v645
    %v647 = vpop.f32.mrf.mxu0
    %648 = vdwg.mxu0
    %649 = vmatpush.bf16.msra.mxu0 %v405
    %650 = vmatpush.bf16.msra.mxu0 %v401
    %651 = vmatpush.bf16.msra.mxu0 %v397
    %652 = vmatpush.bf16.msra.mxu0 %v393
    %653 = vmatpush.bf16.msra.mxu0 %v389
    %654 = vmatpush.bf16.msra.mxu0 %v385
    %655 = vmatpush.bf16.msra.mxu0 %v381
    %656 = vmatpush.bf16.msra.mxu0 %v377
    %657 = vmatmul.bf16.gmra.mxu0 %v621
    %v658 = vpop.f32.mrf.mxu0
    %v659 = vadd.f32 0.0, %v658
    %v660 = vpop.f32.mrf.mxu0
    %661 = vdwg.mxu0
    %662 = vmatpush.bf16.msra.mxu0 %v406
    %663 = vmatpush.bf16.msra.mxu0 %v402
    %664 = vmatpush.bf16.msra.mxu0 %v398
    %665 = vmatpush.bf16.msra.mxu0 %v394
    %666 = vmatpush.bf16.msra.mxu0 %v390
    %667 = vmatpush.bf16.msra.mxu0 %v386
    %668 = vmatpush.bf16.msra.mxu0 %v382
    %669 = vmatpush.bf16.msra.mxu0 %v378
    %670 = vmatmul.bf16.gmra.mxu0 %v621
    %v671 = vpop.f32.mrf.mxu0
    %v672 = vadd.f32 0.0, %v671
    %v673 = vpop.f32.mrf.mxu0
    %674 = vdwg.mxu0
    %v679 = vrot.slane %v633, 4
    %v680 = vrot.slane %v646, 4
    %v681 = vrot.slane %v659, 4
    %v682 = vrot.slane %v672, 4
    %v687 = vadd.f32 %v615, %v679
    %v688 = vadd.f32 %v616, %v680
    %v689 = vadd.f32 %v617, %v681
    %v690 = vadd.f32 %v618, %v682
    %v691 = vmul.f32 %v687, 0.5
    %v692 = vmul.f32 %v688, 0.5
    %v693 = vmul.f32 %v689, 0.5
    %v694 = vtanh.pop %v691
    %v695 = vtanh.pop %v692
    %v696 = vtanh.pop %v693
    %v697 = vmul.f32 %v694, 0.5
    %v698 = vmul.f32 %v695, 0.5
    %v699 = vmul.f32 %v696, 0.5
    %v700 = vadd.f32 %v697, 0.5
    %v701 = vadd.f32 %v698, 0.5
    %v702 = vadd.f32 %v699, 0.5
    %v703 = vtanh.pop %v690
    %v705 = vrot.slane %v608, 6
    %v707 = vmul.f32 %v701, %v705
    %v708 = vmul.f32 %v700, %v703
    %v709 = vadd.f32 %v707, %v708
    %v710 = vtanh.pop %v709
    %v711 = vmul.f32 %v702, %v710
    %vm712 = vcmask 521220
    %713 = vst.msk [vmem:[#allocation5] sm:$0x30] %vm712, %v711
    %vm714 = vcmask 1046020
    %715 = vst.msk [vmem:[#allocation5 + $0x6] sm:$0x30] %vm714, %v711
    %v716 = vld [vmem:[#allocation4] sm:$0xc0]
    %v717 = vld [vmem:[#allocation4 + $0x8] sm:$0xc0]
    %v718 = vld [vmem:[#allocation4 + $0x10] sm:$0xc0]
    %v719 = vld [vmem:[#allocation4 + $0x18] sm:$0xc0]
    %v720 = vpack.c.bf16 %v711, %v711
    %v722 = vrot.slane %v720, 2
    %724 = vmatpush.bf16.msra.mxu0 %v403
    %725 = vmatpush.bf16.msra.mxu0 %v399
    %726 = vmatpush.bf16.msra.mxu0 %v395
    %727 = vmatpush.bf16.msra.mxu0 %v391
    %728 = vmatpush.bf16.msra.mxu0 %v387
    %729 = vmatpush.bf16.msra.mxu0 %v383
    %730 = vmatpush.bf16.msra.mxu0 %v379
    %731 = vmatpush.bf16.msra.mxu0 %v375
    %732 = vmatmul.bf16.gmra.mxu0 %v722
    %v733 = vpop.f32.mrf.mxu0
    %v734 = vadd.f32 0.0, %v733
    %v735 = vpop.f32.mrf.mxu0
    %736 = vdwg.mxu0
    %737 = vmatpush.bf16.msra.mxu0 %v404
    %738 = vmatpush.bf16.msra.mxu0 %v400
    %739 = vmatpush.bf16.msra.mxu0 %v396
    %740 = vmatpush.bf16.msra.mxu0 %v392
    %741 = vmatpush.bf16.msra.mxu0 %v388
    %742 = vmatpush.bf16.msra.mxu0 %v384
    %743 = vmatpush.bf16.msra.mxu0 %v380
    %744 = vmatpush.bf16.msra.mxu0 %v376
    %745 = vmatmul.bf16.gmra.mxu0 %v722
    %v746 = vpop.f32.mrf.mxu0
    %v747 = vadd.f32 0.0, %v746
    %v748 = vpop.f32.mrf.mxu0
    %749 = vdwg.mxu0
    %750 = vmatpush.bf16.msra.mxu0 %v405
    %751 = vmatpush.bf16.msra.mxu0 %v401
    %752 = vmatpush.bf16.msra.mxu0 %v397
    %753 = vmatpush.bf16.msra.mxu0 %v393
    %754 = vmatpush.bf16.msra.mxu0 %v389
    %755 = vmatpush.bf16.msra.mxu0 %v385
    %756 = vmatpush.bf16.msra.mxu0 %v381
    %757 = vmatpush.bf16.msra.mxu0 %v377
    %758 = vmatmul.bf16.gmra.mxu0 %v722
    %v759 = vpop.f32.mrf.mxu0
    %v760 = vadd.f32 0.0, %v759
    %v761 = vpop.f32.mrf.mxu0
    %762 = vdwg.mxu0
    %763 = vmatpush.bf16.msra.mxu0 %v406
    %764 = vmatpush.bf16.msra.mxu0 %v402
    %765 = vmatpush.bf16.msra.mxu0 %v398
    %766 = vmatpush.bf16.msra.mxu0 %v394
    %767 = vmatpush.bf16.msra.mxu0 %v390
    %768 = vmatpush.bf16.msra.mxu0 %v386
    %769 = vmatpush.bf16.msra.mxu0 %v382
    %770 = vmatpush.bf16.msra.mxu0 %v378
    %771 = vmatmul.bf16.gmra.mxu0 %v722
    %v772 = vpop.f32.mrf.mxu0
    %v773 = vadd.f32 0.0, %v772
    %v774 = vpop.f32.mrf.mxu0
    %775 = vdwg.mxu0
    %v780 = vrot.slane %v734, 2
    %v781 = vrot.slane %v747, 2
    %v782 = vrot.slane %v760, 2
    %v783 = vrot.slane %v773, 2
    %v788 = vadd.f32 %v716, %v780
    %v789 = vadd.f32 %v717, %v781
    %v790 = vadd.f32 %v718, %v782
    %v791 = vadd.f32 %v719, %v783
    %v792 = vmul.f32 %v788, 0.5
    %v793 = vmul.f32 %v789, 0.5
    %v794 = vmul.f32 %v790, 0.5
    %v795 = vtanh.pop %v792
    %v796 = vtanh.pop %v793
    %v797 = vtanh.pop %v794
    %v798 = vmul.f32 %v795, 0.5
    %v799 = vmul.f32 %v796, 0.5
    %v800 = vmul.f32 %v797, 0.5
    %v801 = vadd.f32 %v798, 0.5
    %v802 = vadd.f32 %v799, 0.5
    %v803 = vadd.f32 %v800, 0.5
    %v804 = vtanh.pop %v791
    %v806 = vrot.slane %v709, 6
    %v808 = vmul.f32 %v802, %v806
    %v809 = vmul.f32 %v801, %v804
    %v810 = vadd.f32 %v808, %v809
    %v811 = vtanh.pop %v810
    %v812 = vmul.f32 %v803, %v811
    %vm813 = vcmask 523270
    %814 = vst.msk [vmem:[#allocation5] sm:$0xc0] %vm813, %v812
    %vm815 = vcmask 1048070
    %816 = vst.msk [vmem:[#allocation5 + $0x2] sm:$0xc0] %vm815, %v812
    %v817 = vld [vmem:[#allocation4 + $0x20] sm:$0x3]
    %v818 = vld [vmem:[#allocation4 + $0x28] sm:$0x3]
    %v819 = vld [vmem:[#allocation4 + $0x30] sm:$0x3]
    %v820 = vld [vmem:[#allocation4 + $0x38] sm:$0x3]
    %v821 = vpack.c.bf16 %v812, %v812
    %v823 = vrot.slane %v821, 3
    %825 = vmatpush.bf16.msra.mxu0 %v403
    %826 = vmatpush.bf16.msra.mxu0 %v399
    %827 = vmatpush.bf16.msra.mxu0 %v395
    %828 = vmatpush.bf16.msra.mxu0 %v391
    %829 = vmatpush.bf16.msra.mxu0 %v387
    %830 = vmatpush.bf16.msra.mxu0 %v383
    %831 = vmatpush.bf16.msra.mxu0 %v379
    %832 = vmatpush.bf16.msra.mxu0 %v375
    %833 = vmatmul.bf16.gmra.mxu0 %v823
    %v834 = vpop.f32.mrf.mxu0
    %v835 = vadd.f32 0.0, %v834
    %v836 = vpop.f32.mrf.mxu0
    %837 = vdwg.mxu0
    %838 = vmatpush.bf16.msra.mxu0 %v404
    %839 = vmatpush.bf16.msra.mxu0 %v400
    %840 = vmatpush.bf16.msra.mxu0 %v396
    %841 = vmatpush.bf16.msra.mxu0 %v392
    %842 = vmatpush.bf16.msra.mxu0 %v388
    %843 = vmatpush.bf16.msra.mxu0 %v384
    %844 = vmatpush.bf16.msra.mxu0 %v380
    %845 = vmatpush.bf16.msra.mxu0 %v376
    %846 = vmatmul.bf16.gmra.mxu0 %v823
    %v847 = vpop.f32.mrf.mxu0
    %v848 = vadd.f32 0.0, %v847
    %v849 = vpop.f32.mrf.mxu0
    %850 = vdwg.mxu0
    %851 = vmatpush.bf16.msra.mxu0 %v405
    %852 = vmatpush.bf16.msra.mxu0 %v401
    %853 = vmatpush.bf16.msra.mxu0 %v397
    %854 = vmatpush.bf16.msra.mxu0 %v393
    %855 = vmatpush.bf16.msra.mxu0 %v389
    %856 = vmatpush.bf16.msra.mxu0 %v385
    %857 = vmatpush.bf16.msra.mxu0 %v381
    %858 = vmatpush.bf16.msra.mxu0 %v377
    %859 = vmatmul.bf16.gmra.mxu0 %v823
    %v860 = vpop.f32.mrf.mxu0
    %v861 = vadd.f32 0.0, %v860
    %v862 = vpop.f32.mrf.mxu0
    %863 = vdwg.mxu0
    %864 = vmatpush.bf16.msra.mxu0 %v406
    %865 = vmatpush.bf16.msra.mxu0 %v402
    %866 = vmatpush.bf16.msra.mxu0 %v398
    %867 = vmatpush.bf16.msra.mxu0 %v394
    %868 = vmatpush.bf16.msra.mxu0 %v390
    %869 = vmatpush.bf16.msra.mxu0 %v386
    %870 = vmatpush.bf16.msra.mxu0 %v382
    %871 = vmatpush.bf16.msra.mxu0 %v378
    %872 = vmatmul.bf16.gmra.mxu0 %v823
    %v873 = vpop.f32.mrf.mxu0
    %v874 = vadd.f32 0.0, %v873
    %v875 = vpop.f32.mrf.mxu0
    %876 = vdwg.mxu0
    %v877 = vadd.f32 %v817, %v835
    %v878 = vadd.f32 %v818, %v848
    %v879 = vadd.f32 %v819, %v861
    %v880 = vadd.f32 %v820, %v874
    %v881 = vmul.f32 %v877, 0.5
    %v882 = vmul.f32 %v878, 0.5
    %v883 = vmul.f32 %v879, 0.5
    %v884 = vtanh.pop %v881
    %v885 = vtanh.pop %v882
    %v886 = vtanh.pop %v883
    %v887 = vmul.f32 %v884, 0.5
    %v888 = vmul.f32 %v885, 0.5
    %v889 = vmul.f32 %v886, 0.5
    %v890 = vadd.f32 %v887, 0.5
    %v891 = vadd.f32 %v888, 0.5
    %v892 = vadd.f32 %v889, 0.5
    %v893 = vtanh.pop %v880
    %v895 = vrot.slane %v810, 6
    %v897 = vmul.f32 %v891, %v895
    %v898 = vmul.f32 %v890, %v893
    %v899 = vadd.f32 %v897, %v898
    %v900 = vtanh.pop %v899
    %v901 = vmul.f32 %v892, %v900
    %902 = vst.msk [vmem:[#allocation5 + $0x8] sm:$0x3] %vm513, %v901
    %903 = vst.msk [vmem:[#allocation5 + $0x6] sm:$0x3] %vm515, %v901
    %v904 = vld [vmem:[#allocation4 + $0x20] sm:$0xc]
    %v905 = vld [vmem:[#allocation4 + $0x28] sm:$0xc]
    %v906 = vld [vmem:[#allocation4 + $0x30] sm:$0xc]
    %v907 = vld [vmem:[#allocation4 + $0x38] sm:$0xc]
    %v908 = vpack.c.bf16 %v901, %v901
    %909 = vmatpush.bf16.msra.mxu0 %v403
    %910 = vmatpush.bf16.msra.mxu0 %v399
    %911 = vmatpush.bf16.msra.mxu0 %v395
    %912 = vmatpush.bf16.msra.mxu0 %v391
    %913 = vmatpush.bf16.msra.mxu0 %v387
    %914 = vmatpush.bf16.msra.mxu0 %v383
    %915 = vmatpush.bf16.msra.mxu0 %v379
    %916 = vmatpush.bf16.msra.mxu0 %v375
    %917 = vmatmul.bf16.gmra.mxu0 %v908
    %v918 = vpop.f32.mrf.mxu0
    %v919 = vadd.f32 0.0, %v918
    %v920 = vpop.f32.mrf.mxu0
    %921 = vdwg.mxu0
    %922 = vmatpush.bf16.msra.mxu0 %v404
    %923 = vmatpush.bf16.msra.mxu0 %v400
    %924 = vmatpush.bf16.msra.mxu0 %v396
    %925 = vmatpush.bf16.msra.mxu0 %v392
    %926 = vmatpush.bf16.msra.mxu0 %v388
    %927 = vmatpush.bf16.msra.mxu0 %v384
    %928 = vmatpush.bf16.msra.mxu0 %v380
    %929 = vmatpush.bf16.msra.mxu0 %v376
    %930 = vmatmul.bf16.gmra.mxu0 %v908
    %v931 = vpop.f32.mrf.mxu0
    %v932 = vadd.f32 0.0, %v931
    %v933 = vpop.f32.mrf.mxu0
    %934 = vdwg.mxu0
    %935 = vmatpush.bf16.msra.mxu0 %v405
    %936 = vmatpush.bf16.msra.mxu0 %v401
    %937 = vmatpush.bf16.msra.mxu0 %v397
    %938 = vmatpush.bf16.msra.mxu0 %v393
    %939 = vmatpush.bf16.msra.mxu0 %v389
    %940 = vmatpush.bf16.msra.mxu0 %v385
    %941 = vmatpush.bf16.msra.mxu0 %v381
    %942 = vmatpush.bf16.msra.mxu0 %v377
    %943 = vmatmul.bf16.gmra.mxu0 %v908
    %v944 = vpop.f32.mrf.mxu0
    %v945 = vadd.f32 0.0, %v944
    %v946 = vpop.f32.mrf.mxu0
    %947 = vdwg.mxu0
    %948 = vmatpush.bf16.msra.mxu0 %v406
    %949 = vmatpush.bf16.msra.mxu0 %v402
    %950 = vmatpush.bf16.msra.mxu0 %v398
    %951 = vmatpush.bf16.msra.mxu0 %v394
    %952 = vmatpush.bf16.msra.mxu0 %v390
    %953 = vmatpush.bf16.msra.mxu0 %v386
    %954 = vmatpush.bf16.msra.mxu0 %v382
    %955 = vmatpush.bf16.msra.mxu0 %v378
    %956 = vmatmul.bf16.gmra.mxu0 %v908
    %v957 = vpop.f32.mrf.mxu0
    %v958 = vadd.f32 0.0, %v957
    %v959 = vpop.f32.mrf.mxu0
    %960 = vdwg.mxu0
    %v965 = vrot.slane %v919, 6
    %v966 = vrot.slane %v932, 6
    %v967 = vrot.slane %v945, 6
    %v968 = vrot.slane %v958, 6
    %v973 = vadd.f32 %v904, %v965
    %v974 = vadd.f32 %v905, %v966
    %v975 = vadd.f32 %v906, %v967
    %v976 = vadd.f32 %v907, %v968
    %v977 = vmul.f32 %v973, 0.5
    %v978 = vmul.f32 %v974, 0.5
    %v979 = vmul.f32 %v975, 0.5
    %v980 = vtanh.pop %v977
    %v981 = vtanh.pop %v978
    %v982 = vtanh.pop %v979
    %v983 = vmul.f32 %v980, 0.5
    %v984 = vmul.f32 %v981, 0.5
    %v985 = vmul.f32 %v982, 0.5
    %v986 = vadd.f32 %v983, 0.5
    %v987 = vadd.f32 %v984, 0.5
    %v988 = vadd.f32 %v985, 0.5
    %v989 = vtanh.pop %v976
    %v991 = vrot.slane %v899, 6
    %v993 = vmul.f32 %v987, %v991
    %v994 = vmul.f32 %v986, %v989
    %v995 = vadd.f32 %v993, %v994
    %v996 = vtanh.pop %v995
    %v997 = vmul.f32 %v988, %v996
    %998 = vst.msk [vmem:[#allocation5 + $0x8] sm:$0xc] %vm611, %v997
    %999 = vst.msk [vmem:[#allocation5 + $0x2] sm:$0xc] %vm613, %v997
    %v1000 = vld [vmem:[#allocation4 + $0x20] sm:$0x30]
    %v1001 = vld [vmem:[#allocation4 + $0x28] sm:$0x30]
    %v1002 = vld [vmem:[#allocation4 + $0x30] sm:$0x30]
    %v1003 = vld [vmem:[#allocation4 + $0x38] sm:$0x30]
    %v1004 = vpack.c.bf16 %v997, %v997
    %v1006 = vrot.slane %v1004, 1
    %1008 = vmatpush.bf16.msra.mxu0 %v403
    %1009 = vmatpush.bf16.msra.mxu0 %v399
    %1010 = vmatpush.bf16.msra.mxu0 %v395
    %1011 = vmatpush.bf16.msra.mxu0 %v391
    %1012 = vmatpush.bf16.msra.mxu0 %v387
    %1013 = vmatpush.bf16.msra.mxu0 %v383
    %1014 = vmatpush.bf16.msra.mxu0 %v379
    %1015 = vmatpush.bf16.msra.mxu0 %v375
    %1016 = vmatmul.bf16.gmra.mxu0 %v1006
    %v1017 = vpop.f32.mrf.mxu0
    %v1018 = vadd.f32 0.0, %v1017
    %v1019 = vpop.f32.mrf.mxu0
    %1020 = vdwg.mxu0
    %1021 = vmatpush.bf16.msra.mxu0 %v404
    %1022 = vmatpush.bf16.msra.mxu0 %v400
    %1023 = vmatpush.bf16.msra.mxu0 %v396
    %1024 = vmatpush.bf16.msra.mxu0 %v392
    %1025 = vmatpush.bf16.msra.mxu0 %v388
    %1026 = vmatpush.bf16.msra.mxu0 %v384
    %1027 = vmatpush.bf16.msra.mxu0 %v380
    %1028 = vmatpush.bf16.msra.mxu0 %v376
    %1029 = vmatmul.bf16.gmra.mxu0 %v1006
    %v1030 = vpop.f32.mrf.mxu0
    %v1031 = vadd.f32 0.0, %v1030
    %v1032 = vpop.f32.mrf.mxu0
    %1033 = vdwg.mxu0
    %1034 = vmatpush.bf16.msra.mxu0 %v405
    %1035 = vmatpush.bf16.msra.mxu0 %v401
    %1036 = vmatpush.bf16.msra.mxu0 %v397
    %1037 = vmatpush.bf16.msra.mxu0 %v393
    %1038 = vmatpush.bf16.msra.mxu0 %v389
    %1039 = vmatpush.bf16.msra.mxu0 %v385
    %1040 = vmatpush.bf16.msra.mxu0 %v381
    %1041 = vmatpush.bf16.msra.mxu0 %v377
    %1042 = vmatmul.bf16.gmra.mxu0 %v1006
    %v1043 = vpop.f32.mrf.mxu0
    %v1044 = vadd.f32 0.0, %v1043
    %v1045 = vpop.f32.mrf.mxu0
    %1046 = vdwg.mxu0
    %1047 = vmatpush.bf16.msra.mxu0 %v406
    %1048 = vmatpush.bf16.msra.mxu0 %v402
    %1049 = vmatpush.bf16.msra.mxu0 %v398
    %1050 = vmatpush.bf16.msra.mxu0 %v394
    %1051 = vmatpush.bf16.msra.mxu0 %v390
    %1052 = vmatpush.bf16.msra.mxu0 %v386
    %1053 = vmatpush.bf16.msra.mxu0 %v382
    %1054 = vmatpush.bf16.msra.mxu0 %v378
    %1055 = vmatmul.bf16.gmra.mxu0 %v1006
    %v1056 = vpop.f32.mrf.mxu0
    %v1057 = vadd.f32 0.0, %v1056
    %v1058 = vpop.f32.mrf.mxu0
    %1059 = vdwg.mxu0
    %v1064 = vrot.slane %v1018, 4
    %v1065 = vrot.slane %v1031, 4
    %v1066 = vrot.slane %v1044, 4
    %v1067 = vrot.slane %v1057, 4
    %v1072 = vadd.f32 %v1000, %v1064
    %v1073 = vadd.f32 %v1001, %v1065
    %v1074 = vadd.f32 %v1002, %v1066
    %v1075 = vadd.f32 %v1003, %v1067
    %v1076 = vmul.f32 %v1072, 0.5
    %v1077 = vmul.f32 %v1073, 0.5
    %v1078 = vmul.f32 %v1074, 0.5
    %v1079 = vtanh.pop %v1076
    %v1080 = vtanh.pop %v1077
    %v1081 = vtanh.pop %v1078
    %v1082 = vmul.f32 %v1079, 0.5
    %v1083 = vmul.f32 %v1080, 0.5
    %v1084 = vmul.f32 %v1081, 0.5
    %v1085 = vadd.f32 %v1082, 0.5
    %v1086 = vadd.f32 %v1083, 0.5
    %v1087 = vadd.f32 %v1084, 0.5
    %v1088 = vtanh.pop %v1075
    %v1090 = vrot.slane %v995, 6
    %v1092 = vmul.f32 %v1086, %v1090
    %v1093 = vmul.f32 %v1085, %v1088
    %v1094 = vadd.f32 %v1092, %v1093
    %v1095 = vtanh.pop %v1094
    %v1096 = vmul.f32 %v1087, %v1095
    %1097 = vst.msk [vmem:[#allocation5 + $0x8] sm:$0x30] %vm712, %v1096
    %1098 = vst.msk [vmem:[#allocation5 - $0x2] sm:$0x30] %vm714, %v1096
    %v1099 = vld [vmem:[#allocation4 + $0x20] sm:$0xc0]
    %v1100 = vld [vmem:[#allocation4 + $0x28] sm:$0xc0]
    %v1101 = vld [vmem:[#allocation4 + $0x30] sm:$0xc0]
    %v1102 = vld [vmem:[#allocation4 + $0x38] sm:$0xc0]
    %v1103 = vpack.c.bf16 %v1096, %v1096
    %v1105 = vrot.slane %v1103, 2
    %1107 = vmatpush.bf16.msra.mxu0 %v403
    %1108 = vmatpush.bf16.msra.mxu0 %v399
    %1109 = vmatpush.bf16.msra.mxu0 %v395
    %1110 = vmatpush.bf16.msra.mxu0 %v391
    %1111 = vmatpush.bf16.msra.mxu0 %v387
    %1112 = vmatpush.bf16.msra.mxu0 %v383
    %1113 = vmatpush.bf16.msra.mxu0 %v379
    %1114 = vmatpush.bf16.msra.mxu0 %v375
    %1115 = vmatmul.bf16.gmra.mxu0 %v1105
    %v1116 = vpop.f32.mrf.mxu0
    %v1117 = vadd.f32 0.0, %v1116
    %v1118 = vpop.f32.mrf.mxu0
    %1119 = vdwg.mxu0
    %1120 = vmatpush.bf16.msra.mxu0 %v404
    %1121 = vmatpush.bf16.msra.mxu0 %v400
    %1122 = vmatpush.bf16.msra.mxu0 %v396
    %1123 = vmatpush.bf16.msra.mxu0 %v392
    %1124 = vmatpush.bf16.msra.mxu0 %v388
    %1125 = vmatpush.bf16.msra.mxu0 %v384
    %1126 = vmatpush.bf16.msra.mxu0 %v380
    %1127 = vmatpush.bf16.msra.mxu0 %v376
    %1128 = vmatmul.bf16.gmra.mxu0 %v1105
    %v1129 = vpop.f32.mrf.mxu0
    %v1130 = vadd.f32 0.0, %v1129
    %v1131 = vpop.f32.mrf.mxu0
    %1132 = vdwg.mxu0
    %1133 = vmatpush.bf16.msra.mxu0 %v405
    %1134 = vmatpush.bf16.msra.mxu0 %v401
    %1135 = vmatpush.bf16.msra.mxu0 %v397
    %1136 = vmatpush.bf16.msra.mxu0 %v393
    %1137 = vmatpush.bf16.msra.mxu0 %v389
    %1138 = vmatpush.bf16.msra.mxu0 %v385
    %1139 = vmatpush.bf16.msra.mxu0 %v381
    %1140 = vmatpush.bf16.msra.mxu0 %v377
    %1141 = vmatmul.bf16.gmra.mxu0 %v1105
    %v1142 = vpop.f32.mrf.mxu0
    %v1143 = vadd.f32 0.0, %v1142
    %v1144 = vpop.f32.mrf.mxu0
    %1145 = vdwg.mxu0
    %1146 = vmatpush.bf16.msra.mxu0 %v406
    %1147 = vmatpush.bf16.msra.mxu0 %v402
    %1148 = vmatpush.bf16.msra.mxu0 %v398
    %1149 = vmatpush.bf16.msra.mxu0 %v394
    %1150 = vmatpush.bf16.msra.mxu0 %v390
    %1151 = vmatpush.bf16.msra.mxu0 %v386
    %1152 = vmatpush.bf16.msra.mxu0 %v382
    %1153 = vmatpush.bf16.msra.mxu0 %v378
    %1154 = vmatmul.bf16.gmra.mxu0 %v1105
    %v1155 = vpop.f32.mrf.mxu0
    %v1156 = vadd.f32 0.0, %v1155
    %v1157 = vpop.f32.mrf.mxu0
    %1158 = vdwg.mxu0
    %v1163 = vrot.slane %v1117, 2
    %v1164 = vrot.slane %v1130, 2
    %v1165 = vrot.slane %v1143, 2
    %v1166 = vrot.slane %v1156, 2
    %v1171 = vadd.f32 %v1099, %v1163
    %v1172 = vadd.f32 %v1100, %v1164
    %v1173 = vadd.f32 %v1101, %v1165
    %v1174 = vadd.f32 %v1102, %v1166
    %v1175 = vmul.f32 %v1171, 0.5
    %v1176 = vmul.f32 %v1172, 0.5
    %v1177 = vmul.f32 %v1173, 0.5
    %v1178 = vtanh.pop %v1175
    %v1179 = vtanh.pop %v1176
    %v1180 = vtanh.pop %v1177
    %v1181 = vmul.f32 %v1178, 0.5
    %v1182 = vmul.f32 %v1179, 0.5
    %v1183 = vmul.f32 %v1180, 0.5
    %v1184 = vadd.f32 %v1181, 0.5
    %v1185 = vadd.f32 %v1182, 0.5
    %v1186 = vadd.f32 %v1183, 0.5
    %v1187 = vtanh.pop %v1174
    %v1189 = vrot.slane %v1094, 6
    %v1191 = vmul.f32 %v1185, %v1189
    %v1192 = vmul.f32 %v1184, %v1187
    %v1193 = vadd.f32 %v1191, %v1192
    %v1194 = vtanh.pop %v1193
    %v1195 = vmul.f32 %v1186, %v1194
    %1196 = vst.msk [vmem:[#allocation5 + $0x8] sm:$0xc0] %vm813, %v1195
    %1197 = vst.msk [vmem:[#allocation5 - $0x6] sm:$0xc0] %vm815, %v1195
    %v1198 = vld [vmem:[#allocation5] sm:$0xff]
    %v1199 = vld [vmem:[#allocation5 + $0x8] sm:$0xff]
    %v1200 = vld [vmem:[#allocation12] sm:$0xff]
    %v1201 = vld [vmem:[#allocation12 + $0x8] sm:$0xff]
    %v1202 = vld [vmem:[#allocation12 + $0x10] sm:$0xff]
    %v1203 = vld [vmem:[#allocation12 + $0x18] sm:$0xff]
    %v1204 = vld [vmem:[#allocation12 + $0x20] sm:$0xff]
    %v1205 = vld [vmem:[#allocation12 + $0x28] sm:$0xff]
    %v1206 = vld [vmem:[#allocation12 + $0x30] sm:$0xff]
    %v1207 = vld [vmem:[#allocation12 + $0x38] sm:$0xff]
    %v1208 = vld [vmem:[#allocation12 + $0x40] sm:$0xff]
    %v1209 = vld [vmem:[#allocation12 + $0x48] sm:$0xff]
    %v1210 = vld [vmem:[#allocation12 + $0x50] sm:$0xff]
    %v1211 = vld [vmem:[#allocation12 + $0x58] sm:$0xff]
    %v1212 = vld [vmem:[#allocation12 + $0x60] sm:$0xff]
    %v1213 = vld [vmem:[#allocation12 + $0x68] sm:$0xff]
    %v1214 = vld [vmem:[#allocation12 + $0x70] sm:$0xff]
    %v1215 = vld [vmem:[#allocation12 + $0x78] sm:$0xff]
    %v1216 = vld [vmem:[%s5] sm:$0x1]
    %v1218 = vperm.slane %v1216, 0
    %1220 = vmatpush.msra.mxu0 %v1215
    %1221 = vmatpush.msra.mxu0 %v1214
    %1222 = vmatpush.msra.mxu0 %v1213
    %1223 = vmatpush.msra.mxu0 %v1212
    %1224 = vmatpush.msra.mxu0 %v1211
    %1225 = vmatpush.msra.mxu0 %v1210
    %1226 = vmatpush.msra.mxu0 %v1209
    %1227 = vmatpush.msra.mxu0 %v1208
    %1228 = vmatpush.msra.mxu0 %v1207
    %1229 = vmatpush.msra.mxu0 %v1206
    %1230 = vmatpush.msra.mxu0 %v1205
    %1231 = vmatpush.msra.mxu0 %v1204
    %1232 = vmatpush.msra.mxu0 %v1203
    %1233 = vmatpush.msra.mxu0 %v1202
    %1234 = vmatpush.msra.mxu0 %v1201
    %1235 = vmatpush.msra.mxu0 %v1200
    %1236 = vmatmul.f32.gmra.mxu0 %v1198
    %v1237 = vpop.f32.mrf.mxu0
    %v1238 = vadd.f32 %v1218, %v1237
    %1239 = vmatmul.f32.gmra.mxu0 %v1199
    %v1240 = vpop.f32.mrf.mxu0
    %v1241 = vadd.f32 %v1218, %v1240
    %1242 = vdwg.mxu0
    %1243 = vst [vmem:[#allocation14] sm:$0xff] %v1238
    %1244 = vst [vmem:[#allocation14 + $0x8] sm:$0xff] %v1241
    // Predicated region
    $region42: #{tpu_custom_call.1} parent=1 // pred_check
      _
    $region43: #{tpu_custom_call.1} parent=1 // pred_check_branch
      %1246 = sbr.rel (0) target = $region45
    $region44: #{tpu_custom_call.1} parent=1 // pred_region
      %1248 = vsyncadd [#allocation8], 0
      %s1249 = sshll.u32 [#allocation14], 4
      %s1250 = int_to_ptr.vmem [resolvable:$true] %s1249
      %s1251 = sshll.u32 %s6, 4
      %s1252 = int_to_ptr.hbm [resolvable:$true] %s1251
      %1257 = dma.vmem_to_hbm [thread:$0]  %s1250, 256, %s1252, [#allocation8], 128, 128, 8
    $region45: #{tpu_custom_call.1} parent=1 // pred_fallthru
      _
    // Predicated region
    $region46: #{tpu_custom_call.1} parent=1 // pred_check
      _
    $region47: #{tpu_custom_call.1} parent=1 // pred_check_branch
      %1259 = sbr.rel (0) target = $region49
    $region48: #{tpu_custom_call.1} parent=1 // pred_region
      %1261 = dma.done [#allocation8], 256
    $region49: #{tpu_custom_call.1} parent=1 // pred_fallthru
      _
    %1262 = vsyncpa [#allocation7], 1
    %1263 = vsyncpa [#allocation10], 1
    %1264 = vsyncpa [#allocation13], 1
    %1265 = vsyncpa [#allocation8], 1
  %1266 = vsyncmov [#allocation3]
  %s1267 = vpop.sfrf %1266
  %p1268 = scmp.eq.s32.totalorder %s1267, 0
  %p1269 = pneg %p1268
  %1271 = shalt.err (%p1269)

</llo_original>
